<compile_context>
chip_gen: v5e
topology: v5e:2x2
jax: 0.10.0
libtpu: 0.0.40
codegen_flags: <defaults>
</compile_context>

<pallas_src>
import jax
import jax.numpy as jnp
from jax.experimental import pallas as pl
from jax.experimental.pallas import tpu as pltpu


def _fused_conv_linear_kernel(cw_ref, cb_ref, x_ref, w_ref, o_ref):
    """One K-tile of: Linear(view(Conv1x1(x))) with a resident accumulator.

    cw_ref: (3,)     conv weight, SMEM scalars (out_channels=1 folded away)
    cb_ref: (1,)     conv bias, SMEM scalar
    x_ref : (3, tk)  input pixels for this tile (channels x pixels), VMEM
    w_ref : (5, tk)  linear weight slice for this tile, VMEM
    o_ref : (5, 1)   output accumulator (same block for every grid step)
    """
    k = pl.program_id(0)

    @pl.when(k == 0)
    def _():
        # Linear bias is added in the wrapper; start from zero.
        o_ref[...] = jnp.zeros_like(o_ref)

    # 1x1 conv as scalar-splat FMAs over the three channel rows -> (1, tk).
    # The conv bias is added per tile; accumulated over tiles it contributes
    # cb * sum(lin_w) exactly as in the reference.
    conv = (cw_ref[0] * x_ref[0:1, :]
            + cw_ref[1] * x_ref[1:2, :]
            + cw_ref[2] * x_ref[2:3, :]
            + cb_ref[0])

    # Linear partial: broadcast over the 5 output rows, reduce over lanes -> (5, 1)
    o_ref[...] += jnp.sum(w_ref[...] * conv, axis=1, keepdims=True)


def _pick_k_tile(k_total, max_tile=25088):
    """Largest multiple of 128 that divides k_total and is <= max_tile."""
    best = None
    t = 128
    while t <= min(k_total, max_tile):
        if k_total % t == 0:
            best = t
        t += 128
    if best is None:
        raise ValueError(f"K={k_total} must be a multiple of 128")
    return best


@jax.jit
def m_forward(x, conv_w, conv_b, lin_w, lin_b):
    """JAX/Pallas equivalent of M.forward (fp32 path).

    x      : (1, 3, H, W) float32   with H*W == lin_w.shape[1]
    conv_w : (1, 3, 1, 1) float32
    conv_b : (1,)         float32
    lin_w  : (5, H*W)     float32
    lin_b  : (5,)         float32
    returns (1, 5) float32
    """
    # TODO(synk): QuantStub/DeQuantStub are identity in the un-prepared fp32
    # model; int8 observer / fake-quant behavior is not modeled.
    n, c, h, w = x.shape
    assert n == 1 and c == 3, "module's view(1, -1) + Linear imply (1, 3, H, W)"
    k_total = h * w
    out_f, in_f = lin_w.shape
    assert in_f == k_total

    x2d = x.reshape(c, k_total)      # (3, K): channels x pixels, lane-dense
    cw = conv_w.reshape(c)           # (3,)  -> SMEM scalars
    cb = conv_b.reshape(1)           # (1,)  -> SMEM scalar

    tk = _pick_k_tile(k_total)       # 25088 = 196 * 128 for 224x224
    nk = k_total // tk               # 2 grid steps (double-buffered overlap)

    grid_spec = pltpu.PrefetchScalarGridSpec(
        num_scalar_prefetch=0,
        grid=(nk,),
        in_specs=[
            pl.BlockSpec(memory_space=pltpu.MemorySpace.SMEM),   # conv weight
            pl.BlockSpec(memory_space=pltpu.MemorySpace.SMEM),   # conv bias
            pl.BlockSpec((c, tk), lambda k: (0, k)),             # x K-tile
            pl.BlockSpec((out_f, tk), lambda k: (0, k)),         # lin_w K-tile
        ],
        out_specs=pl.BlockSpec((out_f, 1), lambda k: (0, 0)),
    )

    out = pl.pallas_call(
        _fused_conv_linear_kernel,
        out_shape=jax.ShapeDtypeStruct((out_f, 1), jnp.float32),
        grid_spec=grid_spec,
        compiler_params=pltpu.CompilerParams(
            # Single grid axis is a reduction into the resident output block,
            # so it must be "arbitrary".
            dimension_semantics=("arbitrary",),
            vmem_limit_bytes=16 * 1024 * 1024,
        ),
    )(cw, cb, x2d, lin_w)

    # Linear bias folded in the wrapper (keeps it out of the pipelined specs).
    return out.reshape(1, out_f) + lin_b.reshape(1, out_f)


if __name__ == "__main__":
    key = jax.random.PRNGKey(0)
    kx, kcw, kcb, klw, klb = jax.random.split(key, 5)

    H = W_SP = 224  # shapes implied by Linear(224*224, 5) and view(1, -1)
    x = jax.random.normal(kx, (1, 3, H, W_SP), dtype=jnp.float32)
    conv_w = 0.1 * jax.random.normal(kcw, (1, 3, 1, 1), dtype=jnp.float32)
    conv_b = 0.1 * jax.random.normal(kcb, (1,), dtype=jnp.float32)
    lin_w = 0.01 * jax.random.normal(klw, (5, H * W_SP), dtype=jnp.float32)
    lin_b = 0.1 * jax.random.normal(klb, (5,), dtype=jnp.float32)

    y = jax.block_until_ready(m_forward(x, conv_w, conv_b, lin_w, lin_b))
    assert y.shape == (1, 5) and y.dtype == jnp.float32

    # Pure-JAX reference (full f32 precision).
    conv_out = (jnp.einsum("nchw,oc->nohw", x, conv_w[:, :, 0, 0])
                + conv_b[None, :, None, None])
    flat = conv_out.reshape(1, -1)
    ref = jnp.einsum("nk,ok->no", flat, lin_w,
                     precision=jax.lax.Precision.HIGHEST) + lin_b
    assert jnp.allclose(y, ref, rtol=5e-4, atol=5e-4), (y, ref)

    print("KERNEL_OK")
</pallas_src>

<mosaic_0001>
module attributes {stable_mosaic.version = 11 : i64} {
  func.func @_fused_conv_linear_kernel(%arg0: i32, %arg1: memref<3xf32, #tpu.memory_space<smem>>, %arg2: memref<1xf32, #tpu.memory_space<smem>>, %arg3: memref<3x25088xf32, #tpu.memory_space<vmem>>, %arg4: memref<5x25088xf32, #tpu.memory_space<vmem>>, %arg5: memref<5x1xf32, #tpu.memory_space<vmem>>) attributes {dimension_semantics = [#tpu.dimension_semantics<arbitrary>], iteration_bounds = array<i64: 2>, scalar_prefetch = 0 : i64, scratch_operands = 0 : i64, tpu.core_type = #tpu.core_type<tc>, window_params = [{transform_indices = @transform_0, window_bounds = array<i64: 3>}, {transform_indices = @transform_1, window_bounds = array<i64: 1>}, {transform_indices = @transform_2, window_bounds = array<i64: 3, 25088>}, {transform_indices = @transform_3, window_bounds = array<i64: 5, 25088>}, {pipeline_mode = #tpu.pipeline_mode<synchronous>, transform_indices = @transform_4, window_bounds = array<i64: 5, 1>}]} {
    %c0_i32 = arith.constant 0 : i32
    %0 = arith.cmpi eq, %arg0, %c0_i32 : i32
    %1 = arith.extui %0 : i1 to i32
    %c0_i32_0 = arith.constant 0 : i32
    %2 = arith.cmpi ne, %1, %c0_i32_0 : i32
    scf.if %2 {
      %cst_14 = arith.constant 0.000000e+00 : f32
      %28 = vector.broadcast %cst_14 : f32 to vector<5x1xf32>
      %c0_15 = arith.constant 0 : index
      %c0_16 = arith.constant 0 : index
      %29 = vector.load %arg5[%c0_15, %c0_16] : memref<5x1xf32, #tpu.memory_space<vmem>>, vector<5x1xf32>
      tpu.vector_store %arg5[%c0_15, %c0_16], %28 {strides = array<i32>} : memref<5x1xf32, #tpu.memory_space<vmem>>, vector<5x1xf32>,
    } else {
    }
    %c0 = arith.constant 0 : index
    %3 = memref.load %arg1[%c0] : memref<3xf32, #tpu.memory_space<smem>>
    %c0_1 = arith.constant 0 : index
    %c0_2 = arith.constant 0 : index
    %4 = vector.load %arg3[%c0_1, %c0_2] : memref<3x25088xf32, #tpu.memory_space<vmem>>, vector<1x25088xf32>
    %5 = vector.broadcast %3 : f32 to vector<1x25088xf32>
    %6 = arith.mulf %5, %4 : vector<1x25088xf32>
    %c1 = arith.constant 1 : index
    %7 = memref.load %arg1[%c1] : memref<3xf32, #tpu.memory_space<smem>>
    %c1_3 = arith.constant 1 : index
    %c0_4 = arith.constant 0 : index
    %8 = vector.load %arg3[%c1_3, %c0_4] : memref<3x25088xf32, #tpu.memory_space<vmem>>, vector<1x25088xf32>
    %9 = vector.broadcast %7 : f32 to vector<1x25088xf32>
    %10 = arith.mulf %9, %8 : vector<1x25088xf32>
    %11 = arith.addf %6, %10 : vector<1x25088xf32>
    %c2 = arith.constant 2 : index
    %12 = memref.load %arg1[%c2] : memref<3xf32, #tpu.memory_space<smem>>
    %c2_5 = arith.constant 2 : index
    %c0_6 = arith.constant 0 : index
    %13 = vector.load %arg3[%c2_5, %c0_6] : memref<3x25088xf32, #tpu.memory_space<vmem>>, vector<1x25088xf32>
    %14 = vector.broadcast %12 : f32 to vector<1x25088xf32>
    %15 = arith.mulf %14, %13 : vector<1x25088xf32>
    %16 = arith.addf %11, %15 : vector<1x25088xf32>
    %c0_7 = arith.constant 0 : index
    %17 = memref.load %arg2[%c0_7] : memref<1xf32, #tpu.memory_space<smem>>
    %18 = vector.broadcast %17 : f32 to vector<1x25088xf32>
    %19 = arith.addf %16, %18 : vector<1x25088xf32>
    %c0_8 = arith.constant 0 : index
    %c0_9 = arith.constant 0 : index
    %20 = vector.load %arg5[%c0_8, %c0_9] : memref<5x1xf32, #tpu.memory_space<vmem>>, vector<5x1xf32>
    %c0_10 = arith.constant 0 : index
    %c0_11 = arith.constant 0 : index
    %21 = vector.load %arg4[%c0_10, %c0_11] : memref<5x25088xf32, #tpu.memory_space<vmem>>, vector<5x25088xf32>
    %22 = vector.broadcast %19 : vector<1x25088xf32> to vector<5x25088xf32>
    %23 = arith.mulf %21, %22 : vector<5x25088xf32>
    %cst = arith.constant dense<0.000000e+00> : vector<5xf32>
    %24 = vector.multi_reduction <add>, %23, %cst [1] : vector<5x25088xf32> to vector<5xf32>
    %25 = vector.shape_cast %24 : vector<5xf32> to vector<5x1xf32>
    %26 = arith.addf %20, %25 : vector<5x1xf32>
    %c0_12 = arith.constant 0 : index
    %c0_13 = arith.constant 0 : index
    %27 = vector.load %arg5[%c0_12, %c0_13] : memref<5x1xf32, #tpu.memory_space<vmem>>, vector<5x1xf32>
    tpu.vector_store %arg5[%c0_12, %c0_13], %26 {strides = array<i32>} : memref<5x1xf32, #tpu.memory_space<vmem>>, vector<5x1xf32>,
    return
  }
  func.func @transform_0(%arg0: i32) -> i32 {
    %c0_i32 = arith.constant 0 : i32
    %c0_i32_0 = arith.constant 0 : i32
    return %c0_i32 : i32
  }
  func.func @transform_1(%arg0: i32) -> i32 {
    %c0_i32 = arith.constant 0 : i32
    %c0_i32_0 = arith.constant 0 : i32
    return %c0_i32 : i32
  }
  func.func @transform_2(%arg0: i32) -> (i32, i32) {
    %c0_i32 = arith.constant 0 : i32
    %c0_i32_0 = arith.constant 0 : i32
    return %c0_i32, %arg0 : i32, i32
  }
  func.func @transform_3(%arg0: i32) -> (i32, i32) {
    %c0_i32 = arith.constant 0 : i32
    %c0_i32_0 = arith.constant 0 : i32
    return %c0_i32, %arg0 : i32, i32
  }
  func.func @transform_4(%arg0: i32) -> (i32, i32) {
    %c0_i32 = arith.constant 0 : i32
    %c0_i32_0 = arith.constant 0 : i32
    %c0_i32_1 = arith.constant 0 : i32
    return %c0_i32, %c0_i32_0 : i32, i32
  }
}

</mosaic_0001>

<llo_original>
// kernel: m_forward.1
$region0: #{m_forward.1}
  #allocation0 [shape = 'u32[]', space=smem, size = 0x4, offset = 0x4, fixed_abs, tag = 'smem constant byte address 0x4 - core index']
  #allocation1 [shape = 'u32[72,128]{1,0:T(1,128)}', space=vmem, size = 0x9000, scoped, tag = 'internal scratch']
  #allocation2 [shape = 'f32[1]{0:T(128)S(6)}', space=smem, size = 0x200, scoped, tag = 'scoped memory for m_forward.1']
  %s0 = inlined_call_operand.hbm [shape: f32[3], index: 0, kind: input, shape index: {}]
  %s1 = inlined_call_operand.<no memory space> [shape: f32[1], index: 1, kind: input, shape index: {}]
  %s2 = inlined_call_operand.vmem [shape: f32[3,50176], index: 2, kind: input, shape index: {}]
  %s3 = inlined_call_operand.hbm [shape: f32[5,50176], index: 3, kind: input, shape index: {}]
  %s4 = inlined_call_operand.vmem [shape: f32[5,1], index: 4, kind: output, shape index: {}]
  %s5 = sld [smem:[#allocation0]]
  $region61: #{m_forward.1} parent=0
    _
  %s7 = ssub.s32 1, %s5
  %s8 = scalar_select 0, %s7, %s5
  %9 = sst [smem:[#allocation2]] %s1
  $region1: #{m_forward.1} parent=0
    #allocation3 [shape = 'u8[512]{0}', space=smem, size = 0x200, scoped, tag = 'input window, operand 0, single buffered']
    #allocation4 [shape = 's32[2]{0}', space=sflag, size = 0x8, scoped, tag = 'scoped memory for m_forward.1']
    #allocation5 [shape = 's32[2]{0}', space=sflag, size = 0x8, scoped, tag = 'scoped memory for m_forward.1']
    #allocation6 [shape = 'u8[1605632]{0}', space=vmem, size = 0x188000, scoped, tag = 'input window, operand 3']
    %10 = vsyncpa [#allocation5], 0
    %11 = vsyncpa [#allocation4], 0
    %s12 = scalar_lea.sflag [#allocation4], 1
    %13 = vsyncpa %s12, 0
    loop: start=0, step=1, limit=4
    $region2: #{m_forward.1} parent=1 // loop_pre_header
      _
    $region3: #{m_forward.1} parent=1 // loop_header
      %s15 = sphi 0, %s19
      %p16 = scmp.ge.s32.totalorder %s15, 4
      %s23 = sphi 0, %s23
      %s25 = sphi 0, %s23
      %s26 = sphi 0, %s25
      %s40 = sphi 0, %s26
      %s44 = sphi 0, %s44
      %s46 = sphi 0, %s44
      %s47 = sphi 0, %s46
      %s61 = sphi 0, %s47
      %s67 = sphi 0, %s69
      %s70 = sphi 0, %s67
      %s71 = sphi 0, %s70
      %s87 = sphi 0, %s71
      %s93 = sphi 0, %s95
      %s96 = sphi 0, %s93
      %s97 = sphi 0, %s96
      %s113 = sphi 0, %s97
      %s117 = sphi 0, %s117
      %s119 = sphi 0, %s117
      %s120 = sphi 0, %s119
      %s134 = sphi 0, %s120
    $region4: #{m_forward.1} parent=1 // loop_header_branch
      %18 = sbr.rel (%p16) target = $region8
    $region5: #{m_forward.1} parent=1 // loop_body
      %s20 = ssub.s32 %s15, 1
      %s21 = ssub.s32 %s15, 2
      %s22 = sadd.s32 %s15, 1
      %s24 = sadd.s32 %s23, 1
      %p27 = scmp.eq.s32.totalorder %s15, 1
      %p28 = scmp.ne.s32.totalorder %s23, %s25
      %p29 = scmp.eq.s32.totalorder %s15, 0
      %p30 = por %p28, %p29
      %p31 = scmp.ne.s32.totalorder %s23, %s25
      %p32 = scmp.eq.s32.totalorder %s20, 1
      %p33 = por %p31, %p32
      %p34 = scmp.ne.s32.totalorder %s25, %s26
      %p35 = scmp.eq.s32.totalorder %s20, 0
      %p36 = por %p34, %p35
      %p37 = scmp.ne.s32.totalorder %s25, %s26
      %p38 = scmp.eq.s32.totalorder %s21, 1
      %p39 = por %p37, %p38
      %p41 = scmp.ne.s32.totalorder %s26, %s40
      %p42 = scmp.eq.s32.totalorder %s21, 0
      %p43 = por %p41, %p42
      %s45 = sadd.s32 %s44, 1
      %p48 = scmp.eq.s32.totalorder %s15, 1
      %p49 = scmp.ne.s32.totalorder %s44, %s46
      %p50 = scmp.eq.s32.totalorder %s15, 0
      %p51 = por %p49, %p50
      %p52 = scmp.ne.s32.totalorder %s44, %s46
      %p53 = scmp.eq.s32.totalorder %s20, 1
      %p54 = por %p52, %p53
      %p55 = scmp.ne.s32.totalorder %s46, %s47
      %p56 = scmp.eq.s32.totalorder %s20, 0
      %p57 = por %p55, %p56
      %p58 = scmp.ne.s32.totalorder %s46, %s47
      %p59 = scmp.eq.s32.totalorder %s21, 1
      %p60 = por %p58, %p59
      %p62 = scmp.ne.s32.totalorder %s47, %s61
      %p63 = scmp.eq.s32.totalorder %s21, 0
      %p64 = por %p62, %p63
      %s65 = ssub.s32 %s15, %s22
      %p66 = scmp.eq.s32.totalorder %s65, 0
      %s68 = sadd.s32 %s67, 1
      %s69 = scalar_select %p66, %s67, %s68
      %p72 = pneg %p66
      %p73 = scmp.eq.s32.totalorder %s15, 1
      %p74 = por %p72, %p73
      %p75 = scmp.ne.s32.totalorder %s67, %s70
      %p76 = scmp.eq.s32.totalorder %s15, 0
      %p77 = por %p75, %p76
      %p78 = scmp.ne.s32.totalorder %s67, %s70
      %p79 = scmp.eq.s32.totalorder %s20, 1
      %p80 = por %p78, %p79
      %p81 = scmp.ne.s32.totalorder %s70, %s71
      %p82 = scmp.eq.s32.totalorder %s20, 0
      %p83 = por %p81, %p82
      %p84 = scmp.ne.s32.totalorder %s70, %s71
      %p85 = scmp.eq.s32.totalorder %s21, 1
      %p86 = por %p84, %p85
      %p88 = scmp.ne.s32.totalorder %s71, %s87
      %p89 = scmp.eq.s32.totalorder %s21, 0
      %p90 = por %p88, %p89
      %s91 = ssub.s32 %s15, %s22
      %p92 = scmp.eq.s32.totalorder %s91, 0
      %s94 = sadd.s32 %s93, 1
      %s95 = scalar_select %p92, %s93, %s94
      %p98 = pneg %p92
      %p99 = scmp.eq.s32.totalorder %s15, 1
      %p100 = por %p98, %p99
      %p101 = scmp.ne.s32.totalorder %s93, %s96
      %p102 = scmp.eq.s32.totalorder %s15, 0
      %p103 = por %p101, %p102
      %p104 = scmp.ne.s32.totalorder %s93, %s96
      %p105 = scmp.eq.s32.totalorder %s20, 1
      %p106 = por %p104, %p105
      %p107 = scmp.ne.s32.totalorder %s96, %s97
      %p108 = scmp.eq.s32.totalorder %s20, 0
      %p109 = por %p107, %p108
      %p110 = scmp.ne.s32.totalorder %s96, %s97
      %p111 = scmp.eq.s32.totalorder %s21, 1
      %p112 = por %p110, %p111
      %p114 = scmp.ne.s32.totalorder %s97, %s113
      %p115 = scmp.eq.s32.totalorder %s21, 0
      %p116 = por %p114, %p115
      %s118 = sadd.s32 %s117, 1
      %p121 = scmp.eq.s32.totalorder %s15, 1
      %p122 = scmp.ne.s32.totalorder %s117, %s119
      %p123 = scmp.eq.s32.totalorder %s15, 0
      %p124 = por %p122, %p123
      %p125 = scmp.ne.s32.totalorder %s117, %s119
      %p126 = scmp.eq.s32.totalorder %s20, 1
      %p127 = por %p125, %p126
      %p128 = scmp.ne.s32.totalorder %s119, %s120
      %p129 = scmp.eq.s32.totalorder %s20, 0
      %p130 = por %p128, %p129
      %p131 = scmp.ne.s32.totalorder %s119, %s120
      %p132 = scmp.eq.s32.totalorder %s21, 1
      %p133 = por %p131, %p132
      %p135 = scmp.ne.s32.totalorder %s120, %s134
      %p136 = scmp.eq.s32.totalorder %s21, 0
      %p137 = por %p135, %p136
      %p138 = scmp.le.s32.totalorder 1, %s15
      %p139 = scmp.lt.s32.totalorder %s15, 3
      %p140 = pnand %p138, %p139
      %p141 = pneg %p140
      // Predicated region
      $region9: #{m_forward.1} parent=5 // pred_check
        _
      $region10: #{m_forward.1} parent=5 // pred_check_branch
        %143 = sbr.rel (%p140) target = $region12
      $region11: #{m_forward.1} parent=5 // pred_region
        %s144 = ssub.s32 %s15, 1
        // Predicated region
        $region13: #{m_forward.1} parent=11 // pred_check
          %p145 = pneg %p36
        $region14: #{m_forward.1} parent=11 // pred_check_branch
          %147 = sbr.rel (%p145) target = $region16
        $region15: #{m_forward.1} parent=11 // pred_region
          %149 = vsyncadd [#allocation5], 0
          %s151 = sshll.u32 %s0, 4
          %s152 = int_to_ptr.hbm [resolvable:$true] %s151
          %154 = dma.hbm_to_smem %s152, 16, [#allocation3], [#allocation5]
        $region16: #{m_forward.1} parent=11 // pred_fallthru
          _
        // Predicated region
        $region17: #{m_forward.1} parent=11 // pred_check
          %p155 = pneg %p57
        $region18: #{m_forward.1} parent=11 // pred_check_branch
          %157 = sbr.rel (%p155) target = $region20
        $region19: #{m_forward.1} parent=11 // pred_region
          _
        $region20: #{m_forward.1} parent=11 // pred_fallthru
          _
      $region12: #{m_forward.1} parent=5 // pred_fallthru
        _
      %p158 = scmp.lt.s32.totalorder %s15, 2
      // Predicated region
      $region21: #{m_forward.1} parent=5 // pred_check
        %p159 = pneg %p158
      $region22: #{m_forward.1} parent=5 // pred_check_branch
        %161 = sbr.rel (%p159) target = $region24
      $region23: #{m_forward.1} parent=5 // pred_region
        // Predicated region
        $region25: #{m_forward.1} parent=23 // pred_check
          %p162 = pneg %p77
        $region26: #{m_forward.1} parent=23 // pred_check_branch
          %164 = sbr.rel (%p162) target = $region28
        $region27: #{m_forward.1} parent=23 // pred_region
          %s165 = smul.u32 196, %s15
          %p166 = scmp.lt.s32.totalorder %s165, 391
          %s167 = scalar_select %p166, %s165, 391
          %s168 = smul.addr %s167, 4
          %s169 = scalar_lea.vmem %s2, %s168
          %s170 = smul.u32 196, %s15
        $region28: #{m_forward.1} parent=23 // pred_fallthru
          _
        // Predicated region
        $region29: #{m_forward.1} parent=23 // pred_check
          %p171 = pneg %p103
        $region30: #{m_forward.1} parent=23 // pred_check_branch
          %173 = sbr.rel (%p171) target = $region32
        $region31: #{m_forward.1} parent=23 // pred_region
          %s174 = sand.u32 %s93, 1
          %s175 = scalar_lea.sflag [#allocation4], %s174
          %s176 = sand.u32 %s93, 1
          %s177 = smul.addr %s176, 1568
          %s178 = scalar_lea.vmem [#allocation6], %s177
          %s179 = smul.u32 196, %s15
          %181 = vsyncadd %s175, 0
          %s182 = smul.addr %s179, 8
          %s183 = scalar_lea.hbm %s3, %s182
          %s185 = sshll.u32 %s183, 4
          %s186 = int_to_ptr.hbm [resolvable:$true] %s185
          %s187 = sshll.u32 %s178, 4
          %s188 = int_to_ptr.vmem [resolvable:$true] %s187
          %190 = dma.hbm_to_vmem [thread:$0]  %s186, 25088, %s188, %s175
        $region32: #{m_forward.1} parent=23 // pred_fallthru
          _
      $region24: #{m_forward.1} parent=5 // pred_fallthru
        _
      %p191 = scmp.le.s32.totalorder 1, %s15
      %p192 = scmp.lt.s32.totalorder %s15, 3
      %p193 = pnand %p191, %p192
      %p194 = pneg %p193
      // Predicated region
      $region33: #{m_forward.1} parent=5 // pred_check
        _
      $region34: #{m_forward.1} parent=5 // pred_check_branch
        %196 = sbr.rel (%p193) target = $region36
      $region35: #{m_forward.1} parent=5 // pred_region
        %s197 = ssub.s32 %s15, 1
        // Predicated region
        $region37: #{m_forward.1} parent=35 // pred_check
          %p198 = pneg %p36
        $region38: #{m_forward.1} parent=35 // pred_check_branch
          %200 = sbr.rel (%p198) target = $region40
        $region39: #{m_forward.1} parent=35 // pred_region
          %202 = dma.done [#allocation5], 16
        $region40: #{m_forward.1} parent=35 // pred_fallthru
          _
        %s203 = sand.u32 %s96, 1
        %s204 = scalar_lea.sflag [#allocation4], %s203
        %s205 = sand.u32 %s96, 1
        %s206 = smul.addr %s205, 1568
        %s207 = scalar_lea.vmem [#allocation6], %s206
        // Predicated region
        $region41: #{m_forward.1} parent=35 // pred_check
          %p208 = pneg %p109
        $region42: #{m_forward.1} parent=35 // pred_check_branch
          %210 = sbr.rel (%p208) target = $region44
        $region43: #{m_forward.1} parent=35 // pred_region
          %212 = dma.done %s204, 25088
        $region44: #{m_forward.1} parent=35 // pred_fallthru
          _
        %213 = sfence
        %p214 = pneg %p36
        %p215 = pneg %p33
        %p216 = pneg %p57
        %p217 = pneg %p54
        %s218 = smul.u32 196, %s20
        %p219 = scmp.lt.s32.totalorder %s218, 391
        %s220 = scalar_select %p219, %s218, 391
        %s221 = smul.addr %s220, 4
        %s222 = scalar_lea.vmem %s2, %s221
        %p223 = pneg %p83
        %p224 = pneg %p80
        %s225 = sand.u32 %s96, 1
        %s226 = scalar_lea.sflag [#allocation4], %s225
        %s227 = sand.u32 %s96, 1
        %s228 = smul.addr %s227, 1568
        %s229 = scalar_lea.vmem [#allocation6], %s228
        %p230 = pneg %p109
        %p231 = pneg %p106
        %p232 = pneg %p130
        %p233 = pneg %p127
        %s234 = smul.u32 196, %s20
        %p235 = scmp.lt.s32.totalorder %s234, 391
        %s236 = scalar_select %p235, %s234, 391
        %s237 = smul.addr %s236, 4
        %s238 = scalar_lea.vmem %s2, %s237
        %s239 = smul.u32 196, %s20
        %s240 = smul.u32 196, %s20
        %p241 = scmp.eq.s32.totalorder %s20, 0
        // Predicated region
        $region45: #{m_forward.1} parent=35 // pred_check
          %p242 = pneg %p241
        $region46: #{m_forward.1} parent=35 // pred_check_branch
          %244 = sbr.rel (%p242) target = $region48
        $region47: #{m_forward.1} parent=35 // pred_region
          %vm245 = vcmask 4096
          %246 = vst.msk [vmem:[%s4] sm:$0x1f] %vm245, 0.0
        $region48: #{m_forward.1} parent=35 // pred_fallthru
          _
        %s247 = sld [smem:[#allocation3]]
        %v248 = vld [vmem:[%s238] ss:$4 sm:$0xff]
        %s249 = scalar_lea.vmem %s238, 32
        %v250 = vld [vmem:[%s249] ss:$4 sm:$0xff]
        %s251 = scalar_lea.vmem %s238, 64
        %v252 = vld [vmem:[%s251] ss:$4 sm:$0xff]
        %s253 = scalar_lea.vmem %s238, 96
        %v254 = vld [vmem:[%s253] ss:$4 sm:$0xff]
        %s255 = scalar_lea.vmem %s238, 128
        %v256 = vld [vmem:[%s255] ss:$4 sm:$0xff]
        %s257 = scalar_lea.vmem %s238, 160
        %v258 = vld [vmem:[%s257] ss:$4 sm:$0xff]
        %s259 = scalar_lea.vmem %s238, 192
        %v260 = vld [vmem:[%s259] ss:$4 sm:$0xff]
        %s261 = scalar_lea.vmem %s238, 224
        %v262 = vld [vmem:[%s261] ss:$4 sm:$0xff]
        %s263 = scalar_lea.vmem %s238, 256
        %v264 = vld [vmem:[%s263] ss:$4 sm:$0xff]
        %s265 = scalar_lea.vmem %s238, 288
        %v266 = vld [vmem:[%s265] ss:$4 sm:$0xff]
        %s267 = scalar_lea.vmem %s238, 320
        %v268 = vld [vmem:[%s267] ss:$4 sm:$0xff]
        %s269 = scalar_lea.vmem %s238, 352
        %v270 = vld [vmem:[%s269] ss:$4 sm:$0xff]
        %s271 = scalar_lea.vmem %s238, 384
        %v272 = vld [vmem:[%s271] ss:$4 sm:$0xff]
        %s273 = scalar_lea.vmem %s238, 416
        %v274 = vld [vmem:[%s273] ss:$4 sm:$0xff]
        %s275 = scalar_lea.vmem %s238, 448
        %v276 = vld [vmem:[%s275] ss:$4 sm:$0xff]
        %s277 = scalar_lea.vmem %s238, 480
        %v278 = vld [vmem:[%s277] ss:$4 sm:$0xff]
        %s279 = scalar_lea.vmem %s238, 512
        %v280 = vld [vmem:[%s279] ss:$4 sm:$0xff]
        %s281 = scalar_lea.vmem %s238, 544
        %v282 = vld [vmem:[%s281] ss:$4 sm:$0xff]
        %s283 = scalar_lea.vmem %s238, 576
        %v284 = vld [vmem:[%s283] ss:$4 sm:$0xff]
        %s285 = scalar_lea.vmem %s238, 608
        %v286 = vld [vmem:[%s285] ss:$4 sm:$0xff]
        %s287 = scalar_lea.vmem %s238, 640
        %v288 = vld [vmem:[%s287] ss:$4 sm:$0xff]
        %s289 = scalar_lea.vmem %s238, 672
        %v290 = vld [vmem:[%s289] ss:$4 sm:$0xff]
        %s291 = scalar_lea.vmem %s238, 704
        %v292 = vld [vmem:[%s291] ss:$4 sm:$0xff]
        %s293 = scalar_lea.vmem %s238, 736
        %v294 = vld [vmem:[%s293] ss:$4 sm:$0xff]
        %s295 = scalar_lea.vmem %s238, 768
        %v296 = vld [vmem:[%s295] ss:$4 sm:$0xf]
        %v297 = vstv %s247
        %v298 = vmul.f32 %v297, %v248
        %v299 = vmul.f32 %v297, %v250
        %v300 = vmul.f32 %v297, %v252
        %v301 = vmul.f32 %v297, %v254
        %v302 = vmul.f32 %v297, %v256
        %v303 = vmul.f32 %v297, %v258
        %v304 = vmul.f32 %v297, %v260
        %v305 = vmul.f32 %v297, %v262
        %v306 = vmul.f32 %v297, %v264
        %v307 = vmul.f32 %v297, %v266
        %v308 = vmul.f32 %v297, %v268
        %v309 = vmul.f32 %v297, %v270
        %v310 = vmul.f32 %v297, %v272
        %v311 = vmul.f32 %v297, %v274
        %v312 = vmul.f32 %v297, %v276
        %v313 = vmul.f32 %v297, %v278
        %v314 = vmul.f32 %v297, %v280
        %v315 = vmul.f32 %v297, %v282
        %v316 = vmul.f32 %v297, %v284
        %v317 = vmul.f32 %v297, %v286
        %v318 = vmul.f32 %v297, %v288
        %v319 = vmul.f32 %v297, %v290
        %v320 = vmul.f32 %v297, %v292
        %v321 = vmul.f32 %v297, %v294
        %v322 = vmul.f32 %v297, %v296
        %s323 = sld [smem:[#allocation3 + $0x1]]
        %s324 = scalar_lea.vmem %s238, 1
        %v325 = vld [vmem:[%s324] ss:$4 sm:$0xff]
        %s326 = scalar_lea.vmem %s238, 33
        %v327 = vld [vmem:[%s326] ss:$4 sm:$0xff]
        %s328 = scalar_lea.vmem %s238, 65
        %v329 = vld [vmem:[%s328] ss:$4 sm:$0xff]
        %s330 = scalar_lea.vmem %s238, 97
        %v331 = vld [vmem:[%s330] ss:$4 sm:$0xff]
        %s332 = scalar_lea.vmem %s238, 129
        %v333 = vld [vmem:[%s332] ss:$4 sm:$0xff]
        %s334 = scalar_lea.vmem %s238, 161
        %v335 = vld [vmem:[%s334] ss:$4 sm:$0xff]
        %s336 = scalar_lea.vmem %s238, 193
        %v337 = vld [vmem:[%s336] ss:$4 sm:$0xff]
        %s338 = scalar_lea.vmem %s238, 225
        %v339 = vld [vmem:[%s338] ss:$4 sm:$0xff]
        %s340 = scalar_lea.vmem %s238, 257
        %v341 = vld [vmem:[%s340] ss:$4 sm:$0xff]
        %s342 = scalar_lea.vmem %s238, 289
        %v343 = vld [vmem:[%s342] ss:$4 sm:$0xff]
        %s344 = scalar_lea.vmem %s238, 321
        %v345 = vld [vmem:[%s344] ss:$4 sm:$0xff]
        %s346 = scalar_lea.vmem %s238, 353
        %v347 = vld [vmem:[%s346] ss:$4 sm:$0xff]
        %s348 = scalar_lea.vmem %s238, 385
        %v349 = vld [vmem:[%s348] ss:$4 sm:$0xff]
        %s350 = scalar_lea.vmem %s238, 417
        %v351 = vld [vmem:[%s350] ss:$4 sm:$0xff]
        %s352 = scalar_lea.vmem %s238, 449
        %v353 = vld [vmem:[%s352] ss:$4 sm:$0xff]
        %s354 = scalar_lea.vmem %s238, 481
        %v355 = vld [vmem:[%s354] ss:$4 sm:$0xff]
        %s356 = scalar_lea.vmem %s238, 513
        %v357 = vld [vmem:[%s356] ss:$4 sm:$0xff]
        %s358 = scalar_lea.vmem %s238, 545
        %v359 = vld [vmem:[%s358] ss:$4 sm:$0xff]
        %s360 = scalar_lea.vmem %s238, 577
        %v361 = vld [vmem:[%s360] ss:$4 sm:$0xff]
        %s362 = scalar_lea.vmem %s238, 609
        %v363 = vld [vmem:[%s362] ss:$4 sm:$0xff]
        %s364 = scalar_lea.vmem %s238, 641
        %v365 = vld [vmem:[%s364] ss:$4 sm:$0xff]
        %s366 = scalar_lea.vmem %s238, 673
        %v367 = vld [vmem:[%s366] ss:$4 sm:$0xff]
        %s368 = scalar_lea.vmem %s238, 705
        %v369 = vld [vmem:[%s368] ss:$4 sm:$0xff]
        %s370 = scalar_lea.vmem %s238, 737
        %v371 = vld [vmem:[%s370] ss:$4 sm:$0xff]
        %s372 = scalar_lea.vmem %s238, 769
        %v373 = vld [vmem:[%s372] ss:$4 sm:$0xf]
        %v374 = vstv %s323
        %v375 = vmul.f32 %v374, %v325
        %v376 = vmul.f32 %v374, %v327
        %v377 = vmul.f32 %v374, %v329
        %v378 = vmul.f32 %v374, %v331
        %v379 = vmul.f32 %v374, %v333
        %v380 = vmul.f32 %v374, %v335
        %v381 = vmul.f32 %v374, %v337
        %v382 = vmul.f32 %v374, %v339
        %v383 = vmul.f32 %v374, %v341
        %v384 = vmul.f32 %v374, %v343
        %v385 = vmul.f32 %v374, %v345
        %v386 = vmul.f32 %v374, %v347
        %v387 = vmul.f32 %v374, %v349
        %v388 = vmul.f32 %v374, %v351
        %v389 = vmul.f32 %v374, %v353
        %v390 = vmul.f32 %v374, %v355
        %v391 = vmul.f32 %v374, %v357
        %v392 = vmul.f32 %v374, %v359
        %v393 = vmul.f32 %v374, %v361
        %v394 = vmul.f32 %v374, %v363
        %v395 = vmul.f32 %v374, %v365
        %v396 = vmul.f32 %v374, %v367
        %v397 = vmul.f32 %v374, %v369
        %v398 = vmul.f32 %v374, %v371
        %v399 = vmul.f32 %v374, %v373
        %v400 = vadd.f32 %v298, %v375
        %v401 = vadd.f32 %v299, %v376
        %v402 = vadd.f32 %v300, %v377
        %v403 = vadd.f32 %v301, %v378
        %v404 = vadd.f32 %v302, %v379
        %v405 = vadd.f32 %v303, %v380
        %v406 = vadd.f32 %v304, %v381
        %v407 = vadd.f32 %v305, %v382
        %v408 = vadd.f32 %v306, %v383
        %v409 = vadd.f32 %v307, %v384
        %v410 = vadd.f32 %v308, %v385
        %v411 = vadd.f32 %v309, %v386
        %v412 = vadd.f32 %v310, %v387
        %v413 = vadd.f32 %v311, %v388
        %v414 = vadd.f32 %v312, %v389
        %v415 = vadd.f32 %v313, %v390
        %v416 = vadd.f32 %v314, %v391
        %v417 = vadd.f32 %v315, %v392
        %v418 = vadd.f32 %v316, %v393
        %v419 = vadd.f32 %v317, %v394
        %v420 = vadd.f32 %v318, %v395
        %v421 = vadd.f32 %v319, %v396
        %v422 = vadd.f32 %v320, %v397
        %v423 = vadd.f32 %v321, %v398
        %v424 = vadd.f32 %v322, %v399
        %s425 = sld [smem:[#allocation3 + $0x2]]
        %s426 = scalar_lea.vmem %s238, 2
        %v427 = vld [vmem:[%s426] ss:$4 sm:$0xff]
        %s428 = scalar_lea.vmem %s238, 34
        %v429 = vld [vmem:[%s428] ss:$4 sm:$0xff]
        %s430 = scalar_lea.vmem %s238, 66
        %v431 = vld [vmem:[%s430] ss:$4 sm:$0xff]
        %s432 = scalar_lea.vmem %s238, 98
        %v433 = vld [vmem:[%s432] ss:$4 sm:$0xff]
        %s434 = scalar_lea.vmem %s238, 130
        %v435 = vld [vmem:[%s434] ss:$4 sm:$0xff]
        %s436 = scalar_lea.vmem %s238, 162
        %v437 = vld [vmem:[%s436] ss:$4 sm:$0xff]
        %s438 = scalar_lea.vmem %s238, 194
        %v439 = vld [vmem:[%s438] ss:$4 sm:$0xff]
        %s440 = scalar_lea.vmem %s238, 226
        %v441 = vld [vmem:[%s440] ss:$4 sm:$0xff]
        %s442 = scalar_lea.vmem %s238, 258
        %v443 = vld [vmem:[%s442] ss:$4 sm:$0xff]
        %s444 = scalar_lea.vmem %s238, 290
        %v445 = vld [vmem:[%s444] ss:$4 sm:$0xff]
        %s446 = scalar_lea.vmem %s238, 322
        %v447 = vld [vmem:[%s446] ss:$4 sm:$0xff]
        %s448 = scalar_lea.vmem %s238, 354
        %v449 = vld [vmem:[%s448] ss:$4 sm:$0xff]
        %s450 = scalar_lea.vmem %s238, 386
        %v451 = vld [vmem:[%s450] ss:$4 sm:$0xff]
        %s452 = scalar_lea.vmem %s238, 418
        %v453 = vld [vmem:[%s452] ss:$4 sm:$0xff]
        %s454 = scalar_lea.vmem %s238, 450
        %v455 = vld [vmem:[%s454] ss:$4 sm:$0xff]
        %s456 = scalar_lea.vmem %s238, 482
        %v457 = vld [vmem:[%s456] ss:$4 sm:$0xff]
        %s458 = scalar_lea.vmem %s238, 514
        %v459 = vld [vmem:[%s458] ss:$4 sm:$0xff]
        %s460 = scalar_lea.vmem %s238, 546
        %v461 = vld [vmem:[%s460] ss:$4 sm:$0xff]
        %s462 = scalar_lea.vmem %s238, 578
        %v463 = vld [vmem:[%s462] ss:$4 sm:$0xff]
        %s464 = scalar_lea.vmem %s238, 610
        %v465 = vld [vmem:[%s464] ss:$4 sm:$0xff]
        %s466 = scalar_lea.vmem %s238, 642
        %v467 = vld [vmem:[%s466] ss:$4 sm:$0xff]
        %s468 = scalar_lea.vmem %s238, 674
        %v469 = vld [vmem:[%s468] ss:$4 sm:$0xff]
        %s470 = scalar_lea.vmem %s238, 706
        %v471 = vld [vmem:[%s470] ss:$4 sm:$0xff]
        %s472 = scalar_lea.vmem %s238, 738
        %v473 = vld [vmem:[%s472] ss:$4 sm:$0xff]
        %s474 = scalar_lea.vmem %s238, 770
        %v475 = vld [vmem:[%s474] ss:$4 sm:$0xf]
        %v476 = vstv %s425
        %v477 = vmul.f32 %v476, %v427
        %v478 = vmul.f32 %v476, %v429
        %v479 = vmul.f32 %v476, %v431
        %v480 = vmul.f32 %v476, %v433
        %v481 = vmul.f32 %v476, %v435
        %v482 = vmul.f32 %v476, %v437
        %v483 = vmul.f32 %v476, %v439
        %v484 = vmul.f32 %v476, %v441
        %v485 = vmul.f32 %v476, %v443
        %v486 = vmul.f32 %v476, %v445
        %v487 = vmul.f32 %v476, %v447
        %v488 = vmul.f32 %v476, %v449
        %v489 = vmul.f32 %v476, %v451
        %v490 = vmul.f32 %v476, %v453
        %v491 = vmul.f32 %v476, %v455
        %v492 = vmul.f32 %v476, %v457
        %v493 = vmul.f32 %v476, %v459
        %v494 = vmul.f32 %v476, %v461
        %v495 = vmul.f32 %v476, %v463
        %v496 = vmul.f32 %v476, %v465
        %v497 = vmul.f32 %v476, %v467
        %v498 = vmul.f32 %v476, %v469
        %v499 = vmul.f32 %v476, %v471
        %v500 = vmul.f32 %v476, %v473
        %v501 = vmul.f32 %v476, %v475
        %v502 = vadd.f32 %v400, %v477
        %v503 = vadd.f32 %v401, %v478
        %v504 = vadd.f32 %v402, %v479
        %v505 = vadd.f32 %v403, %v480
        %v506 = vadd.f32 %v404, %v481
        %v507 = vadd.f32 %v405, %v482
        %v508 = vadd.f32 %v406, %v483
        %v509 = vadd.f32 %v407, %v484
        %v510 = vadd.f32 %v408, %v485
        %v511 = vadd.f32 %v409, %v486
        %v512 = vadd.f32 %v410, %v487
        %v513 = vadd.f32 %v411, %v488
        %v514 = vadd.f32 %v412, %v489
        %v515 = vadd.f32 %v413, %v490
        %v516 = vadd.f32 %v414, %v491
        %v517 = vadd.f32 %v415, %v492
        %v518 = vadd.f32 %v416, %v493
        %v519 = vadd.f32 %v417, %v494
        %v520 = vadd.f32 %v418, %v495
        %v521 = vadd.f32 %v419, %v496
        %v522 = vadd.f32 %v420, %v497
        %v523 = vadd.f32 %v421, %v498
        %v524 = vadd.f32 %v422, %v499
        %v525 = vadd.f32 %v423, %v500
        %v526 = vadd.f32 %v424, %v501
        %s527 = sld [smem:[#allocation2]]
        %v528 = vstv %s527
        %v529 = vadd.f32 %v502, %v528
        %v530 = vadd.f32 %v503, %v528
        %v531 = vadd.f32 %v504, %v528
        %v532 = vadd.f32 %v505, %v528
        %v533 = vadd.f32 %v506, %v528
        %v534 = vadd.f32 %v507, %v528
        %v535 = vadd.f32 %v508, %v528
        %v536 = vadd.f32 %v509, %v528
        %v537 = vadd.f32 %v510, %v528
        %v538 = vadd.f32 %v511, %v528
        %v539 = vadd.f32 %v512, %v528
        %v540 = vadd.f32 %v513, %v528
        %v541 = vadd.f32 %v514, %v528
        %v542 = vadd.f32 %v515, %v528
        %v543 = vadd.f32 %v516, %v528
        %v544 = vadd.f32 %v517, %v528
        %v545 = vadd.f32 %v518, %v528
        %v546 = vadd.f32 %v519, %v528
        %v547 = vadd.f32 %v520, %v528
        %v548 = vadd.f32 %v521, %v528
        %v549 = vadd.f32 %v522, %v528
        %v550 = vadd.f32 %v523, %v528
        %v551 = vadd.f32 %v524, %v528
        %v552 = vadd.f32 %v525, %v528
        %v553 = vadd.f32 %v526, %v528
        %v554 = vld [vmem:[%s4] sm:$0x1f]
        %v555 = vld [vmem:[%s207] sm:$0x1f]
        %v556 = vld [vmem:[%s207 + $0x8] sm:$0x1f]
        %v557 = vld [vmem:[%s207 + $0x10] sm:$0x1f]
        %v558 = vld [vmem:[%s207 + $0x18] sm:$0x1f]
        %v559 = vld [vmem:[%s207 + $0x20] sm:$0x1f]
        %v560 = vld [vmem:[%s207 + $0x28] sm:$0x1f]
        %v561 = vld [vmem:[%s207 + $0x30] sm:$0x1f]
        %v562 = vld [vmem:[%s207 + $0x38] sm:$0x1f]
        %v563 = vld [vmem:[%s207 + $0x40] sm:$0x1f]
        %v564 = vld [vmem:[%s207 + $0x48] sm:$0x1f]
        %v565 = vld [vmem:[%s207 + $0x50] sm:$0x1f]
        %v566 = vld [vmem:[%s207 + $0x58] sm:$0x1f]
        %v567 = vld [vmem:[%s207 + $0x60] sm:$0x1f]
        %v568 = vld [vmem:[%s207 + $0x68] sm:$0x1f]
        %v569 = vld [vmem:[%s207 + $0x70] sm:$0x1f]
        %v570 = vld [vmem:[%s207 + $0x78] sm:$0x1f]
        %v571 = vld [vmem:[%s207 + $0x80] sm:$0x1f]
        %v572 = vld [vmem:[%s207 + $0x88] sm:$0x1f]
        %v573 = vld [vmem:[%s207 + $0x90] sm:$0x1f]
        %v574 = vld [vmem:[%s207 + $0x98] sm:$0x1f]
        %v575 = vld [vmem:[%s207 + $0xa0] sm:$0x1f]
        %v576 = vld [vmem:[%s207 + $0xa8] sm:$0x1f]
        %v577 = vld [vmem:[%s207 + $0xb0] sm:$0x1f]
        %v578 = vld [vmem:[%s207 + $0xb8] sm:$0x1f]
        %v579 = vld [vmem:[%s207 + $0xc0] sm:$0x1f]
        %v580 = vld [vmem:[%s207 + $0xc8] sm:$0x1f]
        %v581 = vld [vmem:[%s207 + $0xd0] sm:$0x1f]
        %v582 = vld [vmem:[%s207 + $0xd8] sm:$0x1f]
        %v583 = vld [vmem:[%s207 + $0xe0] sm:$0x1f]
        %v584 = vld [vmem:[%s207 + $0xe8] sm:$0x1f]
        %v585 = vld [vmem:[%s207 + $0xf0] sm:$0x1f]
        %v586 = vld [vmem:[%s207 + $0xf8] sm:$0x1f]
        %v587 = vld [vmem:[%s207 + $0x100] sm:$0x1f]
        %v588 = vld [vmem:[%s207 + $0x108] sm:$0x1f]
        %v589 = vld [vmem:[%s207 + $0x110] sm:$0x1f]
        %v590 = vld [vmem:[%s207 + $0x118] sm:$0x1f]
        %v591 = vld [vmem:[%s207 + $0x120] sm:$0x1f]
        %v592 = vld [vmem:[%s207 + $0x128] sm:$0x1f]
        %v593 = vld [vmem:[%s207 + $0x130] sm:$0x1f]
        %v594 = vld [vmem:[%s207 + $0x138] sm:$0x1f]
        %v595 = vld [vmem:[%s207 + $0x140] sm:$0x1f]
        %v596 = vld [vmem:[%s207 + $0x148] sm:$0x1f]
        %v597 = vld [vmem:[%s207 + $0x150] sm:$0x1f]
        %v598 = vld [vmem:[%s207 + $0x158] sm:$0x1f]
        %v599 = vld [vmem:[%s207 + $0x160] sm:$0x1f]
        %v600 = vld [vmem:[%s207 + $0x168] sm:$0x1f]
        %v601 = vld [vmem:[%s207 + $0x170] sm:$0x1f]
        %v602 = vld [vmem:[%s207 + $0x178] sm:$0x1f]
        %v603 = vld [vmem:[%s207 + $0x180] sm:$0x1f]
        %v604 = vld [vmem:[%s207 + $0x188] sm:$0x1f]
        %v605 = vld [vmem:[%s207 + $0x190] sm:$0x1f]
        %v606 = vld [vmem:[%s207 + $0x198] sm:$0x1f]
        %v607 = vld [vmem:[%s207 + $0x1a0] sm:$0x1f]
        %v608 = vld [vmem:[%s207 + $0x1a8] sm:$0x1f]
        %v609 = vld [vmem:[%s207 + $0x1b0] sm:$0x1f]
        %v610 = vld [vmem:[%s207 + $0x1b8] sm:$0x1f]
        %v611 = vld [vmem:[%s207 + $0x1c0] sm:$0x1f]
        %v612 = vld [vmem:[%s207 + $0x1c8] sm:$0x1f]
        %v613 = vld [vmem:[%s207 + $0x1d0] sm:$0x1f]
        %v614 = vld [vmem:[%s207 + $0x1d8] sm:$0x1f]
        %v615 = vld [vmem:[%s207 + $0x1e0] sm:$0x1f]
        %v616 = vld [vmem:[%s207 + $0x1e8] sm:$0x1f]
        %v617 = vld [vmem:[%s207 + $0x1f0] sm:$0x1f]
        %v618 = vld [vmem:[%s207 + $0x1f8] sm:$0x1f]
        %v619 = vld [vmem:[%s207 + $0x200] sm:$0x1f]
        %v620 = vld [vmem:[%s207 + $0x208] sm:$0x1f]
        %v621 = vld [vmem:[%s207 + $0x210] sm:$0x1f]
        %v622 = vld [vmem:[%s207 + $0x218] sm:$0x1f]
        %v623 = vld [vmem:[%s207 + $0x220] sm:$0x1f]
        %v624 = vld [vmem:[%s207 + $0x228] sm:$0x1f]
        %v625 = vld [vmem:[%s207 + $0x230] sm:$0x1f]
        %v626 = vld [vmem:[%s207 + $0x238] sm:$0x1f]
        %v627 = vld [vmem:[%s207 + $0x240] sm:$0x1f]
        %v628 = vld [vmem:[%s207 + $0x248] sm:$0x1f]
        %v629 = vld [vmem:[%s207 + $0x250] sm:$0x1f]
        %v630 = vld [vmem:[%s207 + $0x258] sm:$0x1f]
        %v631 = vld [vmem:[%s207 + $0x260] sm:$0x1f]
        %v632 = vld [vmem:[%s207 + $0x268] sm:$0x1f]
        %v633 = vld [vmem:[%s207 + $0x270] sm:$0x1f]
        %v634 = vld [vmem:[%s207 + $0x278] sm:$0x1f]
        %v635 = vld [vmem:[%s207 + $0x280] sm:$0x1f]
        %v636 = vld [vmem:[%s207 + $0x288] sm:$0x1f]
        %v637 = vld [vmem:[%s207 + $0x290] sm:$0x1f]
        %v638 = vld [vmem:[%s207 + $0x298] sm:$0x1f]
        %v639 = vld [vmem:[%s207 + $0x2a0] sm:$0x1f]
        %v640 = vld [vmem:[%s207 + $0x2a8] sm:$0x1f]
        %v641 = vld [vmem:[%s207 + $0x2b0] sm:$0x1f]
        %v642 = vld [vmem:[%s207 + $0x2b8] sm:$0x1f]
        %v643 = vld [vmem:[%s207 + $0x2c0] sm:$0x1f]
        %v644 = vld [vmem:[%s207 + $0x2c8] sm:$0x1f]
        %v645 = vld [vmem:[%s207 + $0x2d0] sm:$0x1f]
        %v646 = vld [vmem:[%s207 + $0x2d8] sm:$0x1f]
        %v647 = vld [vmem:[%s207 + $0x2e0] sm:$0x1f]
        %v648 = vld [vmem:[%s207 + $0x2e8] sm:$0x1f]
        %v649 = vld [vmem:[%s207 + $0x2f0] sm:$0x1f]
        %v650 = vld [vmem:[%s207 + $0x2f8] sm:$0x1f]
        %v651 = vld [vmem:[%s207 + $0x300] sm:$0x1f]
        %v652 = vld [vmem:[%s207 + $0x308] sm:$0x1f]
        %v653 = vld [vmem:[%s207 + $0x310] sm:$0x1f]
        %v654 = vld [vmem:[%s207 + $0x318] sm:$0x1f]
        %v655 = vld [vmem:[%s207 + $0x320] sm:$0x1f]
        %v656 = vld [vmem:[%s207 + $0x328] sm:$0x1f]
        %v657 = vld [vmem:[%s207 + $0x330] sm:$0x1f]
        %v658 = vld [vmem:[%s207 + $0x338] sm:$0x1f]
        %v659 = vld [vmem:[%s207 + $0x340] sm:$0x1f]
        %v660 = vld [vmem:[%s207 + $0x348] sm:$0x1f]
        %v661 = vld [vmem:[%s207 + $0x350] sm:$0x1f]
        %v662 = vld [vmem:[%s207 + $0x358] sm:$0x1f]
        %v663 = vld [vmem:[%s207 + $0x360] sm:$0x1f]
        %v664 = vld [vmem:[%s207 + $0x368] sm:$0x1f]
        %v665 = vld [vmem:[%s207 + $0x370] sm:$0x1f]
        %v666 = vld [vmem:[%s207 + $0x378] sm:$0x1f]
        %v667 = vld [vmem:[%s207 + $0x380] sm:$0x1f]
        %v668 = vld [vmem:[%s207 + $0x388] sm:$0x1f]
        %v669 = vld [vmem:[%s207 + $0x390] sm:$0x1f]
        %v670 = vld [vmem:[%s207 + $0x398] sm:$0x1f]
        %v671 = vld [vmem:[%s207 + $0x3a0] sm:$0x1f]
        %v672 = vld [vmem:[%s207 + $0x3a8] sm:$0x1f]
        %v673 = vld [vmem:[%s207 + $0x3b0] sm:$0x1f]
        %v674 = vld [vmem:[%s207 + $0x3b8] sm:$0x1f]
        %v675 = vld [vmem:[%s207 + $0x3c0] sm:$0x1f]
        %v676 = vld [vmem:[%s207 + $0x3c8] sm:$0x1f]
        %v677 = vld [vmem:[%s207 + $0x3d0] sm:$0x1f]
        %v678 = vld [vmem:[%s207 + $0x3d8] sm:$0x1f]
        %v679 = vld [vmem:[%s207 + $0x3e0] sm:$0x1f]
        %v680 = vld [vmem:[%s207 + $0x3e8] sm:$0x1f]
        %v681 = vld [vmem:[%s207 + $0x3f0] sm:$0x1f]
        %v682 = vld [vmem:[%s207 + $0x3f8] sm:$0x1f]
        %v683 = vld [vmem:[%s207 + $0x400] sm:$0x1f]
        %v684 = vld [vmem:[%s207 + $0x408] sm:$0x1f]
        %v685 = vld [vmem:[%s207 + $0x410] sm:$0x1f]
        %v686 = vld [vmem:[%s207 + $0x418] sm:$0x1f]
        %v687 = vld [vmem:[%s207 + $0x420] sm:$0x1f]
        %v688 = vld [vmem:[%s207 + $0x428] sm:$0x1f]
        %v689 = vld [vmem:[%s207 + $0x430] sm:$0x1f]
        %v690 = vld [vmem:[%s207 + $0x438] sm:$0x1f]
        %v691 = vld [vmem:[%s207 + $0x440] sm:$0x1f]
        %v692 = vld [vmem:[%s207 + $0x448] sm:$0x1f]
        %v693 = vld [vmem:[%s207 + $0x450] sm:$0x1f]
        %v694 = vld [vmem:[%s207 + $0x458] sm:$0x1f]
        %v695 = vld [vmem:[%s207 + $0x460] sm:$0x1f]
        %v696 = vld [vmem:[%s207 + $0x468] sm:$0x1f]
        %v697 = vld [vmem:[%s207 + $0x470] sm:$0x1f]
        %v698 = vld [vmem:[%s207 + $0x478] sm:$0x1f]
        %v699 = vld [vmem:[%s207 + $0x480] sm:$0x1f]
        %v700 = vld [vmem:[%s207 + $0x488] sm:$0x1f]
        %v701 = vld [vmem:[%s207 + $0x490] sm:$0x1f]
        %v702 = vld [vmem:[%s207 + $0x498] sm:$0x1f]
        %v703 = vld [vmem:[%s207 + $0x4a0] sm:$0x1f]
        %v704 = vld [vmem:[%s207 + $0x4a8] sm:$0x1f]
        %v705 = vld [vmem:[%s207 + $0x4b0] sm:$0x1f]
        %v706 = vld [vmem:[%s207 + $0x4b8] sm:$0x1f]
        %v707 = vld [vmem:[%s207 + $0x4c0] sm:$0x1f]
        %v708 = vld [vmem:[%s207 + $0x4c8] sm:$0x1f]
        %v709 = vld [vmem:[%s207 + $0x4d0] sm:$0x1f]
        %v710 = vld [vmem:[%s207 + $0x4d8] sm:$0x1f]
        %v711 = vld [vmem:[%s207 + $0x4e0] sm:$0x1f]
        %v712 = vld [vmem:[%s207 + $0x4e8] sm:$0x1f]
        %v713 = vld [vmem:[%s207 + $0x4f0] sm:$0x1f]
        %v714 = vld [vmem:[%s207 + $0x4f8] sm:$0x1f]
        %v715 = vld [vmem:[%s207 + $0x500] sm:$0x1f]
        %v716 = vld [vmem:[%s207 + $0x508] sm:$0x1f]
        %v717 = vld [vmem:[%s207 + $0x510] sm:$0x1f]
        %v718 = vld [vmem:[%s207 + $0x518] sm:$0x1f]
        %v719 = vld [vmem:[%s207 + $0x520] sm:$0x1f]
        %v720 = vld [vmem:[%s207 + $0x528] sm:$0x1f]
        %v721 = vld [vmem:[%s207 + $0x530] sm:$0x1f]
        %v722 = vld [vmem:[%s207 + $0x538] sm:$0x1f]
        %v723 = vld [vmem:[%s207 + $0x540] sm:$0x1f]
        %v724 = vld [vmem:[%s207 + $0x548] sm:$0x1f]
        %v725 = vld [vmem:[%s207 + $0x550] sm:$0x1f]
        %v726 = vld [vmem:[%s207 + $0x558] sm:$0x1f]
        %v727 = vld [vmem:[%s207 + $0x560] sm:$0x1f]
        %v728 = vld [vmem:[%s207 + $0x568] sm:$0x1f]
        %v729 = vld [vmem:[%s207 + $0x570] sm:$0x1f]
        %v730 = vld [vmem:[%s207 + $0x578] sm:$0x1f]
        %v731 = vld [vmem:[%s207 + $0x580] sm:$0x1f]
        %v732 = vld [vmem:[%s207 + $0x588] sm:$0x1f]
        %v733 = vld [vmem:[%s207 + $0x590] sm:$0x1f]
        %v734 = vld [vmem:[%s207 + $0x598] sm:$0x1f]
        %v735 = vld [vmem:[%s207 + $0x5a0] sm:$0x1f]
        %v736 = vld [vmem:[%s207 + $0x5a8] sm:$0x1f]
        %v737 = vld [vmem:[%s207 + $0x5b0] sm:$0x1f]
        %v738 = vld [vmem:[%s207 + $0x5b8] sm:$0x1f]
        %v739 = vld [vmem:[%s207 + $0x5c0] sm:$0x1f]
        %v740 = vld [vmem:[%s207 + $0x5c8] sm:$0x1f]
        %v741 = vld [vmem:[%s207 + $0x5d0] sm:$0x1f]
        %v742 = vld [vmem:[%s207 + $0x5d8] sm:$0x1f]
        %v743 = vld [vmem:[%s207 + $0x5e0] sm:$0x1f]
        %v744 = vld [vmem:[%s207 + $0x5e8] sm:$0x1f]
        %v745 = vld [vmem:[%s207 + $0x5f0] sm:$0x1f]
        %v746 = vld [vmem:[%s207 + $0x5f8] sm:$0x1f]
        %v747 = vld [vmem:[%s207 + $0x600] sm:$0x1f]
        %v748 = vld [vmem:[%s207 + $0x608] sm:$0x1f]
        %v749 = vld [vmem:[%s207 + $0x610] sm:$0x1f]
        %v750 = vld [vmem:[%s207 + $0x618] sm:$0x1f]
        %v776 = vperm.slane %v529, 0
        %v777 = vperm.slane %v529, 1
        %v778 = vperm.slane %v529, 2
        %v779 = vperm.slane %v529, 3
        %v780 = vperm.slane %v529, 4
        %v781 = vperm.slane %v529, 5
        %v782 = vperm.slane %v529, 6
        %v783 = vperm.slane %v529, 7
        %v784 = vperm.slane %v530, 0
        %v785 = vperm.slane %v530, 1
        %v786 = vperm.slane %v530, 2
        %v787 = vperm.slane %v530, 3
        %v788 = vperm.slane %v530, 4
        %v789 = vperm.slane %v530, 5
        %v790 = vperm.slane %v530, 6
        %v791 = vperm.slane %v530, 7
        %v792 = vperm.slane %v531, 0
        %v793 = vperm.slane %v531, 1
        %v794 = vperm.slane %v531, 2
        %v795 = vperm.slane %v531, 3
        %v796 = vperm.slane %v531, 4
        %v797 = vperm.slane %v531, 5
        %v798 = vperm.slane %v531, 6
        %v799 = vperm.slane %v531, 7
        %v800 = vperm.slane %v532, 0
        %v801 = vperm.slane %v532, 1
        %v802 = vperm.slane %v532, 2
        %v803 = vperm.slane %v532, 3
        %v804 = vperm.slane %v532, 4
        %v805 = vperm.slane %v532, 5
        %v806 = vperm.slane %v532, 6
        %v807 = vperm.slane %v532, 7
        %v808 = vperm.slane %v533, 0
        %v809 = vperm.slane %v533, 1
        %v810 = vperm.slane %v533, 2
        %v811 = vperm.slane %v533, 3
        %v812 = vperm.slane %v533, 4
        %v813 = vperm.slane %v533, 5
        %v814 = vperm.slane %v533, 6
        %v815 = vperm.slane %v533, 7
        %v816 = vperm.slane %v534, 0
        %v817 = vperm.slane %v534, 1
        %v818 = vperm.slane %v534, 2
        %v819 = vperm.slane %v534, 3
        %v820 = vperm.slane %v534, 4
        %v821 = vperm.slane %v534, 5
        %v822 = vperm.slane %v534, 6
        %v823 = vperm.slane %v534, 7
        %v824 = vperm.slane %v535, 0
        %v825 = vperm.slane %v535, 1
        %v826 = vperm.slane %v535, 2
        %v827 = vperm.slane %v535, 3
        %v828 = vperm.slane %v535, 4
        %v829 = vperm.slane %v535, 5
        %v830 = vperm.slane %v535, 6
        %v831 = vperm.slane %v535, 7
        %v832 = vperm.slane %v536, 0
        %v833 = vperm.slane %v536, 1
        %v834 = vperm.slane %v536, 2
        %v835 = vperm.slane %v536, 3
        %v836 = vperm.slane %v536, 4
        %v837 = vperm.slane %v536, 5
        %v838 = vperm.slane %v536, 6
        %v839 = vperm.slane %v536, 7
        %v840 = vperm.slane %v537, 0
        %v841 = vperm.slane %v537, 1
        %v842 = vperm.slane %v537, 2
        %v843 = vperm.slane %v537, 3
        %v844 = vperm.slane %v537, 4
        %v845 = vperm.slane %v537, 5
        %v846 = vperm.slane %v537, 6
        %v847 = vperm.slane %v537, 7
        %v848 = vperm.slane %v538, 0
        %v849 = vperm.slane %v538, 1
        %v850 = vperm.slane %v538, 2
        %v851 = vperm.slane %v538, 3
        %v852 = vperm.slane %v538, 4
        %v853 = vperm.slane %v538, 5
        %v854 = vperm.slane %v538, 6
        %v855 = vperm.slane %v538, 7
        %v856 = vperm.slane %v539, 0
        %v857 = vperm.slane %v539, 1
        %v858 = vperm.slane %v539, 2
        %v859 = vperm.slane %v539, 3
        %v860 = vperm.slane %v539, 4
        %v861 = vperm.slane %v539, 5
        %v862 = vperm.slane %v539, 6
        %v863 = vperm.slane %v539, 7
        %v864 = vperm.slane %v540, 0
        %v865 = vperm.slane %v540, 1
        %v866 = vperm.slane %v540, 2
        %v867 = vperm.slane %v540, 3
        %v868 = vperm.slane %v540, 4
        %v869 = vperm.slane %v540, 5
        %v870 = vperm.slane %v540, 6
        %v871 = vperm.slane %v540, 7
        %v872 = vperm.slane %v541, 0
        %v873 = vperm.slane %v541, 1
        %v874 = vperm.slane %v541, 2
        %v875 = vperm.slane %v541, 3
        %v876 = vperm.slane %v541, 4
        %v877 = vperm.slane %v541, 5
        %v878 = vperm.slane %v541, 6
        %v879 = vperm.slane %v541, 7
        %v880 = vperm.slane %v542, 0
        %v881 = vperm.slane %v542, 1
        %v882 = vperm.slane %v542, 2
        %v883 = vperm.slane %v542, 3
        %v884 = vperm.slane %v542, 4
        %v885 = vperm.slane %v542, 5
        %v886 = vperm.slane %v542, 6
        %v887 = vperm.slane %v542, 7
        %v888 = vperm.slane %v543, 0
        %v889 = vperm.slane %v543, 1
        %v890 = vperm.slane %v543, 2
        %v891 = vperm.slane %v543, 3
        %v892 = vperm.slane %v543, 4
        %v893 = vperm.slane %v543, 5
        %v894 = vperm.slane %v543, 6
        %v895 = vperm.slane %v543, 7
        %v896 = vperm.slane %v544, 0
        %v897 = vperm.slane %v544, 1
        %v898 = vperm.slane %v544, 2
        %v899 = vperm.slane %v544, 3
        %v900 = vperm.slane %v544, 4
        %v901 = vperm.slane %v544, 5
        %v902 = vperm.slane %v544, 6
        %v903 = vperm.slane %v544, 7
        %v904 = vperm.slane %v545, 0
        %v905 = vperm.slane %v545, 1
        %v906 = vperm.slane %v545, 2
        %v907 = vperm.slane %v545, 3
        %v908 = vperm.slane %v545, 4
        %v909 = vperm.slane %v545, 5
        %v910 = vperm.slane %v545, 6
        %v911 = vperm.slane %v545, 7
        %v912 = vperm.slane %v546, 0
        %v913 = vperm.slane %v546, 1
        %v914 = vperm.slane %v546, 2
        %v915 = vperm.slane %v546, 3
        %v916 = vperm.slane %v546, 4
        %v917 = vperm.slane %v546, 5
        %v918 = vperm.slane %v546, 6
        %v919 = vperm.slane %v546, 7
        %v920 = vperm.slane %v547, 0
        %v921 = vperm.slane %v547, 1
        %v922 = vperm.slane %v547, 2
        %v923 = vperm.slane %v547, 3
        %v924 = vperm.slane %v547, 4
        %v925 = vperm.slane %v547, 5
        %v926 = vperm.slane %v547, 6
        %v927 = vperm.slane %v547, 7
        %v928 = vperm.slane %v548, 0
        %v929 = vperm.slane %v548, 1
        %v930 = vperm.slane %v548, 2
        %v931 = vperm.slane %v548, 3
        %v932 = vperm.slane %v548, 4
        %v933 = vperm.slane %v548, 5
        %v934 = vperm.slane %v548, 6
        %v935 = vperm.slane %v548, 7
        %v936 = vperm.slane %v549, 0
        %v937 = vperm.slane %v549, 1
        %v938 = vperm.slane %v549, 2
        %v939 = vperm.slane %v549, 3
        %v940 = vperm.slane %v549, 4
        %v941 = vperm.slane %v549, 5
        %v942 = vperm.slane %v549, 6
        %v943 = vperm.slane %v549, 7
        %v944 = vperm.slane %v550, 0
        %v945 = vperm.slane %v550, 1
        %v946 = vperm.slane %v550, 2
        %v947 = vperm.slane %v550, 3
        %v948 = vperm.slane %v550, 4
        %v949 = vperm.slane %v550, 5
        %v950 = vperm.slane %v550, 6
        %v951 = vperm.slane %v550, 7
        %v952 = vperm.slane %v551, 0
        %v953 = vperm.slane %v551, 1
        %v954 = vperm.slane %v551, 2
        %v955 = vperm.slane %v551, 3
        %v956 = vperm.slane %v551, 4
        %v957 = vperm.slane %v551, 5
        %v958 = vperm.slane %v551, 6
        %v959 = vperm.slane %v551, 7
        %v960 = vperm.slane %v552, 0
        %v961 = vperm.slane %v552, 1
        %v962 = vperm.slane %v552, 2
        %v963 = vperm.slane %v552, 3
        %v964 = vperm.slane %v552, 4
        %v965 = vperm.slane %v552, 5
        %v966 = vperm.slane %v552, 6
        %v967 = vperm.slane %v552, 7
        %v968 = vperm.slane %v553, 0
        %v969 = vperm.slane %v553, 1
        %v970 = vperm.slane %v553, 2
        %v971 = vperm.slane %v553, 3
        %v1168 = vmul.f32 %v555, %v776
        %v1169 = vmul.f32 %v556, %v777
        %v1170 = vmul.f32 %v557, %v778
        %v1171 = vmul.f32 %v558, %v779
        %v1172 = vmul.f32 %v559, %v780
        %v1173 = vmul.f32 %v560, %v781
        %v1174 = vmul.f32 %v561, %v782
        %v1175 = vmul.f32 %v562, %v783
        %v1176 = vmul.f32 %v563, %v784
        %v1177 = vmul.f32 %v564, %v785
        %v1178 = vmul.f32 %v565, %v786
        %v1179 = vmul.f32 %v566, %v787
        %v1180 = vmul.f32 %v567, %v788
        %v1181 = vmul.f32 %v568, %v789
        %v1182 = vmul.f32 %v569, %v790
        %v1183 = vmul.f32 %v570, %v791
        %v1184 = vmul.f32 %v571, %v792
        %v1185 = vmul.f32 %v572, %v793
        %v1186 = vmul.f32 %v573, %v794
        %v1187 = vmul.f32 %v574, %v795
        %v1188 = vmul.f32 %v575, %v796
        %v1189 = vmul.f32 %v576, %v797
        %v1190 = vmul.f32 %v577, %v798
        %v1191 = vmul.f32 %v578, %v799
        %v1192 = vmul.f32 %v579, %v800
        %v1193 = vmul.f32 %v580, %v801
        %v1194 = vmul.f32 %v581, %v802
        %v1195 = vmul.f32 %v582, %v803
        %v1196 = vmul.f32 %v583, %v804
        %v1197 = vmul.f32 %v584, %v805
        %v1198 = vmul.f32 %v585, %v806
        %v1199 = vmul.f32 %v586, %v807
        %v1200 = vmul.f32 %v587, %v808
        %v1201 = vmul.f32 %v588, %v809
        %v1202 = vmul.f32 %v589, %v810
        %v1203 = vmul.f32 %v590, %v811
        %v1204 = vmul.f32 %v591, %v812
        %v1205 = vmul.f32 %v592, %v813
        %v1206 = vmul.f32 %v593, %v814
        %v1207 = vmul.f32 %v594, %v815
        %v1208 = vmul.f32 %v595, %v816
        %v1209 = vmul.f32 %v596, %v817
        %v1210 = vmul.f32 %v597, %v818
        %v1211 = vmul.f32 %v598, %v819
        %v1212 = vmul.f32 %v599, %v820
        %v1213 = vmul.f32 %v600, %v821
        %v1214 = vmul.f32 %v601, %v822
        %v1215 = vmul.f32 %v602, %v823
        %v1216 = vmul.f32 %v603, %v824
        %v1217 = vmul.f32 %v604, %v825
        %v1218 = vmul.f32 %v605, %v826
        %v1219 = vmul.f32 %v606, %v827
        %v1220 = vmul.f32 %v607, %v828
        %v1221 = vmul.f32 %v608, %v829
        %v1222 = vmul.f32 %v609, %v830
        %v1223 = vmul.f32 %v610, %v831
        %v1224 = vmul.f32 %v611, %v832
        %v1225 = vmul.f32 %v612, %v833
        %v1226 = vmul.f32 %v613, %v834
        %v1227 = vmul.f32 %v614, %v835
        %v1228 = vmul.f32 %v615, %v836
        %v1229 = vmul.f32 %v616, %v837
        %v1230 = vmul.f32 %v617, %v838
        %v1231 = vmul.f32 %v618, %v839
        %v1232 = vmul.f32 %v619, %v840
        %v1233 = vmul.f32 %v620, %v841
        %v1234 = vmul.f32 %v621, %v842
        %v1235 = vmul.f32 %v622, %v843
        %v1236 = vmul.f32 %v623, %v844
        %v1237 = vmul.f32 %v624, %v845
        %v1238 = vmul.f32 %v625, %v846
        %v1239 = vmul.f32 %v626, %v847
        %v1240 = vmul.f32 %v627, %v848
        %v1241 = vmul.f32 %v628, %v849
        %v1242 = vmul.f32 %v629, %v850
        %v1243 = vmul.f32 %v630, %v851
        %v1244 = vmul.f32 %v631, %v852
        %v1245 = vmul.f32 %v632, %v853
        %v1246 = vmul.f32 %v633, %v854
        %v1247 = vmul.f32 %v634, %v855
        %v1248 = vmul.f32 %v635, %v856
        %v1249 = vmul.f32 %v636, %v857
        %v1250 = vmul.f32 %v637, %v858
        %v1251 = vmul.f32 %v638, %v859
        %v1252 = vmul.f32 %v639, %v860
        %v1253 = vmul.f32 %v640, %v861
        %v1254 = vmul.f32 %v641, %v862
        %v1255 = vmul.f32 %v642, %v863
        %v1256 = vmul.f32 %v643, %v864
        %v1257 = vmul.f32 %v644, %v865
        %v1258 = vmul.f32 %v645, %v866
        %v1259 = vmul.f32 %v646, %v867
        %v1260 = vmul.f32 %v647, %v868
        %v1261 = vmul.f32 %v648, %v869
        %v1262 = vmul.f32 %v649, %v870
        %v1263 = vmul.f32 %v650, %v871
        %v1264 = vmul.f32 %v651, %v872
        %v1265 = vmul.f32 %v652, %v873
        %v1266 = vmul.f32 %v653, %v874
        %v1267 = vmul.f32 %v654, %v875
        %v1268 = vmul.f32 %v655, %v876
        %v1269 = vmul.f32 %v656, %v877
        %v1270 = vmul.f32 %v657, %v878
        %v1271 = vmul.f32 %v658, %v879
        %v1272 = vmul.f32 %v659, %v880
        %v1273 = vmul.f32 %v660, %v881
        %v1274 = vmul.f32 %v661, %v882
        %v1275 = vmul.f32 %v662, %v883
        %v1276 = vmul.f32 %v663, %v884
        %v1277 = vmul.f32 %v664, %v885
        %v1278 = vmul.f32 %v665, %v886
        %v1279 = vmul.f32 %v666, %v887
        %v1280 = vmul.f32 %v667, %v888
        %v1281 = vmul.f32 %v668, %v889
        %v1282 = vmul.f32 %v669, %v890
        %v1283 = vmul.f32 %v670, %v891
        %v1284 = vmul.f32 %v671, %v892
        %v1285 = vmul.f32 %v672, %v893
        %v1286 = vmul.f32 %v673, %v894
        %v1287 = vmul.f32 %v674, %v895
        %v1288 = vmul.f32 %v675, %v896
        %v1289 = vmul.f32 %v676, %v897
        %v1290 = vmul.f32 %v677, %v898
        %v1291 = vmul.f32 %v678, %v899
        %v1292 = vmul.f32 %v679, %v900
        %v1293 = vmul.f32 %v680, %v901
        %v1294 = vmul.f32 %v681, %v902
        %v1295 = vmul.f32 %v682, %v903
        %v1296 = vmul.f32 %v683, %v904
        %v1297 = vmul.f32 %v684, %v905
        %v1298 = vmul.f32 %v685, %v906
        %v1299 = vmul.f32 %v686, %v907
        %v1300 = vmul.f32 %v687, %v908
        %v1301 = vmul.f32 %v688, %v909
        %v1302 = vmul.f32 %v689, %v910
        %v1303 = vmul.f32 %v690, %v911
        %v1304 = vmul.f32 %v691, %v912
        %v1305 = vmul.f32 %v692, %v913
        %v1306 = vmul.f32 %v693, %v914
        %v1307 = vmul.f32 %v694, %v915
        %v1308 = vmul.f32 %v695, %v916
        %v1309 = vmul.f32 %v696, %v917
        %v1310 = vmul.f32 %v697, %v918
        %v1311 = vmul.f32 %v698, %v919
        %v1312 = vmul.f32 %v699, %v920
        %v1313 = vmul.f32 %v700, %v921
        %v1314 = vmul.f32 %v701, %v922
        %v1315 = vmul.f32 %v702, %v923
        %v1316 = vmul.f32 %v703, %v924
        %v1317 = vmul.f32 %v704, %v925
        %v1318 = vmul.f32 %v705, %v926
        %v1319 = vmul.f32 %v706, %v927
        %v1320 = vmul.f32 %v707, %v928
        %v1321 = vmul.f32 %v708, %v929
        %v1322 = vmul.f32 %v709, %v930
        %v1323 = vmul.f32 %v710, %v931
        %v1324 = vmul.f32 %v711, %v932
        %v1325 = vmul.f32 %v712, %v933
        %v1326 = vmul.f32 %v713, %v934
        %v1327 = vmul.f32 %v714, %v935
        %v1328 = vmul.f32 %v715, %v936
        %v1329 = vmul.f32 %v716, %v937
        %v1330 = vmul.f32 %v717, %v938
        %v1331 = vmul.f32 %v718, %v939
        %v1332 = vmul.f32 %v719, %v940
        %v1333 = vmul.f32 %v720, %v941
        %v1334 = vmul.f32 %v721, %v942
        %v1335 = vmul.f32 %v722, %v943
        %v1336 = vmul.f32 %v723, %v944
        %v1337 = vmul.f32 %v724, %v945
        %v1338 = vmul.f32 %v725, %v946
        %v1339 = vmul.f32 %v726, %v947
        %v1340 = vmul.f32 %v727, %v948
        %v1341 = vmul.f32 %v728, %v949
        %v1342 = vmul.f32 %v729, %v950
        %v1343 = vmul.f32 %v730, %v951
        %v1344 = vmul.f32 %v731, %v952
        %v1345 = vmul.f32 %v732, %v953
        %v1346 = vmul.f32 %v733, %v954
        %v1347 = vmul.f32 %v734, %v955
        %v1348 = vmul.f32 %v735, %v956
        %v1349 = vmul.f32 %v736, %v957
        %v1350 = vmul.f32 %v737, %v958
        %v1351 = vmul.f32 %v738, %v959
        %v1352 = vmul.f32 %v739, %v960
        %v1353 = vmul.f32 %v740, %v961
        %v1354 = vmul.f32 %v741, %v962
        %v1355 = vmul.f32 %v742, %v963
        %v1356 = vmul.f32 %v743, %v964
        %v1357 = vmul.f32 %v744, %v965
        %v1358 = vmul.f32 %v745, %v966
        %v1359 = vmul.f32 %v746, %v967
        %v1360 = vmul.f32 %v747, %v968
        %v1361 = vmul.f32 %v748, %v969
        %v1362 = vmul.f32 %v749, %v970
        %v1363 = vmul.f32 %v750, %v971
        %vm1364 = vcmask 1044480
        %v1365 = vsel %vm1364, %v1168, 0.0
        %v1366 = vsel %vm1364, %v1169, 0.0
        %v1367 = vadd.f32 %v1365, %v1366
        %v1368 = vsel %vm1364, %v1170, 0.0
        %v1369 = vadd.f32 %v1367, %v1368
        %v1370 = vsel %vm1364, %v1171, 0.0
        %v1371 = vadd.f32 %v1369, %v1370
        %v1372 = vsel %vm1364, %v1172, 0.0
        %v1373 = vadd.f32 %v1371, %v1372
        %v1374 = vsel %vm1364, %v1173, 0.0
        %v1375 = vadd.f32 %v1373, %v1374
        %v1376 = vsel %vm1364, %v1174, 0.0
        %v1377 = vadd.f32 %v1375, %v1376
        %v1378 = vsel %vm1364, %v1175, 0.0
        %v1379 = vadd.f32 %v1377, %v1378
        %v1380 = vsel %vm1364, %v1176, 0.0
        %v1381 = vadd.f32 %v1379, %v1380
        %v1382 = vsel %vm1364, %v1177, 0.0
        %v1383 = vadd.f32 %v1381, %v1382
        %v1384 = vsel %vm1364, %v1178, 0.0
        %v1385 = vadd.f32 %v1383, %v1384
        %v1386 = vsel %vm1364, %v1179, 0.0
        %v1387 = vadd.f32 %v1385, %v1386
        %v1388 = vsel %vm1364, %v1180, 0.0
        %v1389 = vadd.f32 %v1387, %v1388
        %v1390 = vsel %vm1364, %v1181, 0.0
        %v1391 = vadd.f32 %v1389, %v1390
        %v1392 = vsel %vm1364, %v1182, 0.0
        %v1393 = vadd.f32 %v1391, %v1392
        %v1394 = vsel %vm1364, %v1183, 0.0
        %v1395 = vadd.f32 %v1393, %v1394
        %v1396 = vsel %vm1364, %v1184, 0.0
        %v1397 = vadd.f32 %v1395, %v1396
        %v1398 = vsel %vm1364, %v1185, 0.0
        %v1399 = vadd.f32 %v1397, %v1398
        %v1400 = vsel %vm1364, %v1186, 0.0
        %v1401 = vadd.f32 %v1399, %v1400
        %v1402 = vsel %vm1364, %v1187, 0.0
        %v1403 = vadd.f32 %v1401, %v1402
        %v1404 = vsel %vm1364, %v1188, 0.0
        %v1405 = vadd.f32 %v1403, %v1404
        %v1406 = vsel %vm1364, %v1189, 0.0
        %v1407 = vadd.f32 %v1405, %v1406
        %v1408 = vsel %vm1364, %v1190, 0.0
        %v1409 = vadd.f32 %v1407, %v1408
        %v1410 = vsel %vm1364, %v1191, 0.0
        %v1411 = vadd.f32 %v1409, %v1410
        %v1412 = vsel %vm1364, %v1192, 0.0
        %v1413 = vadd.f32 %v1411, %v1412
        %v1414 = vsel %vm1364, %v1193, 0.0
        %v1415 = vadd.f32 %v1413, %v1414
        %v1416 = vsel %vm1364, %v1194, 0.0
        %v1417 = vadd.f32 %v1415, %v1416
        %v1418 = vsel %vm1364, %v1195, 0.0
        %v1419 = vadd.f32 %v1417, %v1418
        %v1420 = vsel %vm1364, %v1196, 0.0
        %v1421 = vadd.f32 %v1419, %v1420
        %v1422 = vsel %vm1364, %v1197, 0.0
        %v1423 = vadd.f32 %v1421, %v1422
        %v1424 = vsel %vm1364, %v1198, 0.0
        %v1425 = vadd.f32 %v1423, %v1424
        %v1426 = vsel %vm1364, %v1199, 0.0
        %v1427 = vadd.f32 %v1425, %v1426
        %v1428 = vsel %vm1364, %v1200, 0.0
        %v1429 = vadd.f32 %v1427, %v1428
        %v1430 = vsel %vm1364, %v1201, 0.0
        %v1431 = vadd.f32 %v1429, %v1430
        %v1432 = vsel %vm1364, %v1202, 0.0
        %v1433 = vadd.f32 %v1431, %v1432
        %v1434 = vsel %vm1364, %v1203, 0.0
        %v1435 = vadd.f32 %v1433, %v1434
        %v1436 = vsel %vm1364, %v1204, 0.0
        %v1437 = vadd.f32 %v1435, %v1436
        %v1438 = vsel %vm1364, %v1205, 0.0
        %v1439 = vadd.f32 %v1437, %v1438
        %v1440 = vsel %vm1364, %v1206, 0.0
        %v1441 = vadd.f32 %v1439, %v1440
        %v1442 = vsel %vm1364, %v1207, 0.0
        %v1443 = vadd.f32 %v1441, %v1442
        %v1444 = vsel %vm1364, %v1208, 0.0
        %v1445 = vadd.f32 %v1443, %v1444
        %v1446 = vsel %vm1364, %v1209, 0.0
        %v1447 = vadd.f32 %v1445, %v1446
        %v1448 = vsel %vm1364, %v1210, 0.0
        %v1449 = vadd.f32 %v1447, %v1448
        %v1450 = vsel %vm1364, %v1211, 0.0
        %v1451 = vadd.f32 %v1449, %v1450
        %v1452 = vsel %vm1364, %v1212, 0.0
        %v1453 = vadd.f32 %v1451, %v1452
        %v1454 = vsel %vm1364, %v1213, 0.0
        %v1455 = vadd.f32 %v1453, %v1454
        %v1456 = vsel %vm1364, %v1214, 0.0
        %v1457 = vadd.f32 %v1455, %v1456
        %v1458 = vsel %vm1364, %v1215, 0.0
        %v1459 = vadd.f32 %v1457, %v1458
        %v1460 = vsel %vm1364, %v1216, 0.0
        %v1461 = vadd.f32 %v1459, %v1460
        %v1462 = vsel %vm1364, %v1217, 0.0
        %v1463 = vadd.f32 %v1461, %v1462
        %v1464 = vsel %vm1364, %v1218, 0.0
        %v1465 = vadd.f32 %v1463, %v1464
        %v1466 = vsel %vm1364, %v1219, 0.0
        %v1467 = vadd.f32 %v1465, %v1466
        %v1468 = vsel %vm1364, %v1220, 0.0
        %v1469 = vadd.f32 %v1467, %v1468
        %v1470 = vsel %vm1364, %v1221, 0.0
        %v1471 = vadd.f32 %v1469, %v1470
        %v1472 = vsel %vm1364, %v1222, 0.0
        %v1473 = vadd.f32 %v1471, %v1472
        %v1474 = vsel %vm1364, %v1223, 0.0
        %v1475 = vadd.f32 %v1473, %v1474
        %v1476 = vsel %vm1364, %v1224, 0.0
        %v1477 = vadd.f32 %v1475, %v1476
        %v1478 = vsel %vm1364, %v1225, 0.0
        %v1479 = vadd.f32 %v1477, %v1478
        %v1480 = vsel %vm1364, %v1226, 0.0
        %v1481 = vadd.f32 %v1479, %v1480
        %v1482 = vsel %vm1364, %v1227, 0.0
        %v1483 = vadd.f32 %v1481, %v1482
        %v1484 = vsel %vm1364, %v1228, 0.0
        %v1485 = vadd.f32 %v1483, %v1484
        %v1486 = vsel %vm1364, %v1229, 0.0
        %v1487 = vadd.f32 %v1485, %v1486
        %v1488 = vsel %vm1364, %v1230, 0.0
        %v1489 = vadd.f32 %v1487, %v1488
        %v1490 = vsel %vm1364, %v1231, 0.0
        %v1491 = vadd.f32 %v1489, %v1490
        %v1492 = vsel %vm1364, %v1232, 0.0
        %v1493 = vadd.f32 %v1491, %v1492
        %v1494 = vsel %vm1364, %v1233, 0.0
        %v1495 = vadd.f32 %v1493, %v1494
        %v1496 = vsel %vm1364, %v1234, 0.0
        %v1497 = vadd.f32 %v1495, %v1496
        %v1498 = vsel %vm1364, %v1235, 0.0
        %v1499 = vadd.f32 %v1497, %v1498
        %v1500 = vsel %vm1364, %v1236, 0.0
        %v1501 = vadd.f32 %v1499, %v1500
        %v1502 = vsel %vm1364, %v1237, 0.0
        %v1503 = vadd.f32 %v1501, %v1502
        %v1504 = vsel %vm1364, %v1238, 0.0
        %v1505 = vadd.f32 %v1503, %v1504
        %v1506 = vsel %vm1364, %v1239, 0.0
        %v1507 = vadd.f32 %v1505, %v1506
        %v1508 = vsel %vm1364, %v1240, 0.0
        %v1509 = vadd.f32 %v1507, %v1508
        %v1510 = vsel %vm1364, %v1241, 0.0
        %v1511 = vadd.f32 %v1509, %v1510
        %v1512 = vsel %vm1364, %v1242, 0.0
        %v1513 = vadd.f32 %v1511, %v1512
        %v1514 = vsel %vm1364, %v1243, 0.0
        %v1515 = vadd.f32 %v1513, %v1514
        %v1516 = vsel %vm1364, %v1244, 0.0
        %v1517 = vadd.f32 %v1515, %v1516
        %v1518 = vsel %vm1364, %v1245, 0.0
        %v1519 = vadd.f32 %v1517, %v1518
        %v1520 = vsel %vm1364, %v1246, 0.0
        %v1521 = vadd.f32 %v1519, %v1520
        %v1522 = vsel %vm1364, %v1247, 0.0
        %v1523 = vadd.f32 %v1521, %v1522
        %v1524 = vsel %vm1364, %v1248, 0.0
        %v1525 = vadd.f32 %v1523, %v1524
        %v1526 = vsel %vm1364, %v1249, 0.0
        %v1527 = vadd.f32 %v1525, %v1526
        %v1528 = vsel %vm1364, %v1250, 0.0
        %v1529 = vadd.f32 %v1527, %v1528
        %v1530 = vsel %vm1364, %v1251, 0.0
        %v1531 = vadd.f32 %v1529, %v1530
        %v1532 = vsel %vm1364, %v1252, 0.0
        %v1533 = vadd.f32 %v1531, %v1532
        %v1534 = vsel %vm1364, %v1253, 0.0
        %v1535 = vadd.f32 %v1533, %v1534
        %v1536 = vsel %vm1364, %v1254, 0.0
        %v1537 = vadd.f32 %v1535, %v1536
        %v1538 = vsel %vm1364, %v1255, 0.0
        %v1539 = vadd.f32 %v1537, %v1538
        %v1540 = vsel %vm1364, %v1256, 0.0
        %v1541 = vadd.f32 %v1539, %v1540
        %v1542 = vsel %vm1364, %v1257, 0.0
        %v1543 = vadd.f32 %v1541, %v1542
        %v1544 = vsel %vm1364, %v1258, 0.0
        %v1545 = vadd.f32 %v1543, %v1544
        %v1546 = vsel %vm1364, %v1259, 0.0
        %v1547 = vadd.f32 %v1545, %v1546
        %v1548 = vsel %vm1364, %v1260, 0.0
        %v1549 = vadd.f32 %v1547, %v1548
        %v1550 = vsel %vm1364, %v1261, 0.0
        %v1551 = vadd.f32 %v1549, %v1550
        %v1552 = vsel %vm1364, %v1262, 0.0
        %v1553 = vadd.f32 %v1551, %v1552
        %v1554 = vsel %vm1364, %v1263, 0.0
        %v1555 = vadd.f32 %v1553, %v1554
        %v1556 = vsel %vm1364, %v1264, 0.0
        %v1557 = vadd.f32 %v1555, %v1556
        %v1558 = vsel %vm1364, %v1265, 0.0
        %v1559 = vadd.f32 %v1557, %v1558
        %v1560 = vsel %vm1364, %v1266, 0.0
        %v1561 = vadd.f32 %v1559, %v1560
        %v1562 = vsel %vm1364, %v1267, 0.0
        %v1563 = vadd.f32 %v1561, %v1562
        %v1564 = vsel %vm1364, %v1268, 0.0
        %v1565 = vadd.f32 %v1563, %v1564
        %v1566 = vsel %vm1364, %v1269, 0.0
        %v1567 = vadd.f32 %v1565, %v1566
        %v1568 = vsel %vm1364, %v1270, 0.0
        %v1569 = vadd.f32 %v1567, %v1568
        %v1570 = vsel %vm1364, %v1271, 0.0
        %v1571 = vadd.f32 %v1569, %v1570
        %v1572 = vsel %vm1364, %v1272, 0.0
        %v1573 = vadd.f32 %v1571, %v1572
        %v1574 = vsel %vm1364, %v1273, 0.0
        %v1575 = vadd.f32 %v1573, %v1574
        %v1576 = vsel %vm1364, %v1274, 0.0
        %v1577 = vadd.f32 %v1575, %v1576
        %v1578 = vsel %vm1364, %v1275, 0.0
        %v1579 = vadd.f32 %v1577, %v1578
        %v1580 = vsel %vm1364, %v1276, 0.0
        %v1581 = vadd.f32 %v1579, %v1580
        %v1582 = vsel %vm1364, %v1277, 0.0
        %v1583 = vadd.f32 %v1581, %v1582
        %v1584 = vsel %vm1364, %v1278, 0.0
        %v1585 = vadd.f32 %v1583, %v1584
        %v1586 = vsel %vm1364, %v1279, 0.0
        %v1587 = vadd.f32 %v1585, %v1586
        %v1588 = vsel %vm1364, %v1280, 0.0
        %v1589 = vadd.f32 %v1587, %v1588
        %v1590 = vsel %vm1364, %v1281, 0.0
        %v1591 = vadd.f32 %v1589, %v1590
        %v1592 = vsel %vm1364, %v1282, 0.0
        %v1593 = vadd.f32 %v1591, %v1592
        %v1594 = vsel %vm1364, %v1283, 0.0
        %v1595 = vadd.f32 %v1593, %v1594
        %v1596 = vsel %vm1364, %v1284, 0.0
        %v1597 = vadd.f32 %v1595, %v1596
        %v1598 = vsel %vm1364, %v1285, 0.0
        %v1599 = vadd.f32 %v1597, %v1598
        %v1600 = vsel %vm1364, %v1286, 0.0
        %v1601 = vadd.f32 %v1599, %v1600
        %v1602 = vsel %vm1364, %v1287, 0.0
        %v1603 = vadd.f32 %v1601, %v1602
        %v1604 = vsel %vm1364, %v1288, 0.0
        %v1605 = vadd.f32 %v1603, %v1604
        %v1606 = vsel %vm1364, %v1289, 0.0
        %v1607 = vadd.f32 %v1605, %v1606
        %v1608 = vsel %vm1364, %v1290, 0.0
        %v1609 = vadd.f32 %v1607, %v1608
        %v1610 = vsel %vm1364, %v1291, 0.0
        %v1611 = vadd.f32 %v1609, %v1610
        %v1612 = vsel %vm1364, %v1292, 0.0
        %v1613 = vadd.f32 %v1611, %v1612
        %v1614 = vsel %vm1364, %v1293, 0.0
        %v1615 = vadd.f32 %v1613, %v1614
        %v1616 = vsel %vm1364, %v1294, 0.0
        %v1617 = vadd.f32 %v1615, %v1616
        %v1618 = vsel %vm1364, %v1295, 0.0
        %v1619 = vadd.f32 %v1617, %v1618
        %v1620 = vsel %vm1364, %v1296, 0.0
        %v1621 = vadd.f32 %v1619, %v1620
        %v1622 = vsel %vm1364, %v1297, 0.0
        %v1623 = vadd.f32 %v1621, %v1622
        %v1624 = vsel %vm1364, %v1298, 0.0
        %v1625 = vadd.f32 %v1623, %v1624
        %v1626 = vsel %vm1364, %v1299, 0.0
        %v1627 = vadd.f32 %v1625, %v1626
        %v1628 = vsel %vm1364, %v1300, 0.0
        %v1629 = vadd.f32 %v1627, %v1628
        %v1630 = vsel %vm1364, %v1301, 0.0
        %v1631 = vadd.f32 %v1629, %v1630
        %v1632 = vsel %vm1364, %v1302, 0.0
        %v1633 = vadd.f32 %v1631, %v1632
        %v1634 = vsel %vm1364, %v1303, 0.0
        %v1635 = vadd.f32 %v1633, %v1634
        %v1636 = vsel %vm1364, %v1304, 0.0
        %v1637 = vadd.f32 %v1635, %v1636
        %v1638 = vsel %vm1364, %v1305, 0.0
        %v1639 = vadd.f32 %v1637, %v1638
        %v1640 = vsel %vm1364, %v1306, 0.0
        %v1641 = vadd.f32 %v1639, %v1640
        %v1642 = vsel %vm1364, %v1307, 0.0
        %v1643 = vadd.f32 %v1641, %v1642
        %v1644 = vsel %vm1364, %v1308, 0.0
        %v1645 = vadd.f32 %v1643, %v1644
        %v1646 = vsel %vm1364, %v1309, 0.0
        %v1647 = vadd.f32 %v1645, %v1646
        %v1648 = vsel %vm1364, %v1310, 0.0
        %v1649 = vadd.f32 %v1647, %v1648
        %v1650 = vsel %vm1364, %v1311, 0.0
        %v1651 = vadd.f32 %v1649, %v1650
        %v1652 = vsel %vm1364, %v1312, 0.0
        %v1653 = vadd.f32 %v1651, %v1652
        %v1654 = vsel %vm1364, %v1313, 0.0
        %v1655 = vadd.f32 %v1653, %v1654
        %v1656 = vsel %vm1364, %v1314, 0.0
        %v1657 = vadd.f32 %v1655, %v1656
        %v1658 = vsel %vm1364, %v1315, 0.0
        %v1659 = vadd.f32 %v1657, %v1658
        %v1660 = vsel %vm1364, %v1316, 0.0
        %v1661 = vadd.f32 %v1659, %v1660
        %v1662 = vsel %vm1364, %v1317, 0.0
        %v1663 = vadd.f32 %v1661, %v1662
        %v1664 = vsel %vm1364, %v1318, 0.0
        %v1665 = vadd.f32 %v1663, %v1664
        %v1666 = vsel %vm1364, %v1319, 0.0
        %v1667 = vadd.f32 %v1665, %v1666
        %v1668 = vsel %vm1364, %v1320, 0.0
        %v1669 = vadd.f32 %v1667, %v1668
        %v1670 = vsel %vm1364, %v1321, 0.0
        %v1671 = vadd.f32 %v1669, %v1670
        %v1672 = vsel %vm1364, %v1322, 0.0
        %v1673 = vadd.f32 %v1671, %v1672
        %v1674 = vsel %vm1364, %v1323, 0.0
        %v1675 = vadd.f32 %v1673, %v1674
        %v1676 = vsel %vm1364, %v1324, 0.0
        %v1677 = vadd.f32 %v1675, %v1676
        %v1678 = vsel %vm1364, %v1325, 0.0
        %v1679 = vadd.f32 %v1677, %v1678
        %v1680 = vsel %vm1364, %v1326, 0.0
        %v1681 = vadd.f32 %v1679, %v1680
        %v1682 = vsel %vm1364, %v1327, 0.0
        %v1683 = vadd.f32 %v1681, %v1682
        %v1684 = vsel %vm1364, %v1328, 0.0
        %v1685 = vadd.f32 %v1683, %v1684
        %v1686 = vsel %vm1364, %v1329, 0.0
        %v1687 = vadd.f32 %v1685, %v1686
        %v1688 = vsel %vm1364, %v1330, 0.0
        %v1689 = vadd.f32 %v1687, %v1688
        %v1690 = vsel %vm1364, %v1331, 0.0
        %v1691 = vadd.f32 %v1689, %v1690
        %v1692 = vsel %vm1364, %v1332, 0.0
        %v1693 = vadd.f32 %v1691, %v1692
        %v1694 = vsel %vm1364, %v1333, 0.0
        %v1695 = vadd.f32 %v1693, %v1694
        %v1696 = vsel %vm1364, %v1334, 0.0
        %v1697 = vadd.f32 %v1695, %v1696
        %v1698 = vsel %vm1364, %v1335, 0.0
        %v1699 = vadd.f32 %v1697, %v1698
        %v1700 = vsel %vm1364, %v1336, 0.0
        %v1701 = vadd.f32 %v1699, %v1700
        %v1702 = vsel %vm1364, %v1337, 0.0
        %v1703 = vadd.f32 %v1701, %v1702
        %v1704 = vsel %vm1364, %v1338, 0.0
        %v1705 = vadd.f32 %v1703, %v1704
        %v1706 = vsel %vm1364, %v1339, 0.0
        %v1707 = vadd.f32 %v1705, %v1706
        %v1708 = vsel %vm1364, %v1340, 0.0
        %v1709 = vadd.f32 %v1707, %v1708
        %v1710 = vsel %vm1364, %v1341, 0.0
        %v1711 = vadd.f32 %v1709, %v1710
        %v1712 = vsel %vm1364, %v1342, 0.0
        %v1713 = vadd.f32 %v1711, %v1712
        %v1714 = vsel %vm1364, %v1343, 0.0
        %v1715 = vadd.f32 %v1713, %v1714
        %v1716 = vsel %vm1364, %v1344, 0.0
        %v1717 = vadd.f32 %v1715, %v1716
        %v1718 = vsel %vm1364, %v1345, 0.0
        %v1719 = vadd.f32 %v1717, %v1718
        %v1720 = vsel %vm1364, %v1346, 0.0
        %v1721 = vadd.f32 %v1719, %v1720
        %v1722 = vsel %vm1364, %v1347, 0.0
        %v1723 = vadd.f32 %v1721, %v1722
        %v1724 = vsel %vm1364, %v1348, 0.0
        %v1725 = vadd.f32 %v1723, %v1724
        %v1726 = vsel %vm1364, %v1349, 0.0
        %v1727 = vadd.f32 %v1725, %v1726
        %v1728 = vsel %vm1364, %v1350, 0.0
        %v1729 = vadd.f32 %v1727, %v1728
        %v1730 = vsel %vm1364, %v1351, 0.0
        %v1731 = vadd.f32 %v1729, %v1730
        %v1732 = vsel %vm1364, %v1352, 0.0
        %v1733 = vadd.f32 %v1731, %v1732
        %v1734 = vsel %vm1364, %v1353, 0.0
        %v1735 = vadd.f32 %v1733, %v1734
        %v1736 = vsel %vm1364, %v1354, 0.0
        %v1737 = vadd.f32 %v1735, %v1736
        %v1738 = vsel %vm1364, %v1355, 0.0
        %v1739 = vadd.f32 %v1737, %v1738
        %v1740 = vsel %vm1364, %v1356, 0.0
        %v1741 = vadd.f32 %v1739, %v1740
        %v1742 = vsel %vm1364, %v1357, 0.0
        %v1743 = vadd.f32 %v1741, %v1742
        %v1744 = vsel %vm1364, %v1358, 0.0
        %v1745 = vadd.f32 %v1743, %v1744
        %v1746 = vsel %vm1364, %v1359, 0.0
        %v1747 = vadd.f32 %v1745, %v1746
        %v1748 = vsel %vm1364, %v1360, 0.0
        %v1749 = vadd.f32 %v1747, %v1748
        %v1750 = vsel %vm1364, %v1361, 0.0
        %v1751 = vadd.f32 %v1749, %v1750
        %v1752 = vsel %vm1364, %v1362, 0.0
        %v1753 = vadd.f32 %v1751, %v1752
        %v1754 = vsel %vm1364, %v1363, 0.0
        %v1755 = vadd.f32 %v1753, %v1754
        %1756 = vadd.xlane.f32.xlu0 %v1755
        %v1757 = vpop.xlane.xlu0 %1756
        %v1758 = vadd.f32 %v554, %v1757
        %vm1759 = vcmask 4096
        %1760 = vst.msk [vmem:[%s4] sm:$0x1f] %vm1759, %v1758
        // Predicated region
        $region49: #{m_forward.1} parent=35 // pred_check
          %p1761 = pneg %p127
        $region50: #{m_forward.1} parent=35 // pred_check_branch
          %1763 = sbr.rel (%p1761) target = $region52
        $region51: #{m_forward.1} parent=35 // pred_region
          _
        $region52: #{m_forward.1} parent=35 // pred_fallthru
          _
        // Predicated region
        $region53: #{m_forward.1} parent=35 // pred_check
          %p1764 = pneg %p127
        $region54: #{m_forward.1} parent=35 // pred_check_branch
          %1766 = sbr.rel (%p1764) target = $region56
        $region55: #{m_forward.1} parent=35 // pred_region
          _
        $region56: #{m_forward.1} parent=35 // pred_fallthru
          _
      $region36: #{m_forward.1} parent=5 // pred_fallthru
        _
      %p1767 = scmp.le.s32.totalorder 2, %s15
      // Predicated region
      $region57: #{m_forward.1} parent=5 // pred_check
        %p1768 = pneg %p1767
      $region58: #{m_forward.1} parent=5 // pred_check_branch
        %1770 = sbr.rel (%p1768) target = $region60
      $region59: #{m_forward.1} parent=5 // pred_region
        %s1771 = ssub.s32 %s15, 2
      $region60: #{m_forward.1} parent=5 // pred_fallthru
        _
    $region6: #{m_forward.1} parent=1 // loop_footer
      %s19 = sadd.s32 1, %s15
    $region7: #{m_forward.1} parent=1 // loop_footer_branch
      %14 = sbr.rel target = $region3
    $region8: #{m_forward.1} parent=1 // loop_exit
      _
    %1772 = vsyncpa [#allocation4], 1
    %s1773 = scalar_lea.sflag [#allocation4], 1
    %1774 = vsyncpa %s1773, 1
    %1775 = vsyncpa [#allocation5], 1
    %s1776 = scalar_lea.sflag [#allocation5], 1
    %1777 = vsyncpa %s1776, 1

</llo_original>
